<compile_context>
chip_gen: v5e
topology: v5e:2x2
jax: 0.10.0
libtpu: 0.0.40
codegen_flags: <defaults>
</compile_context>

<pallas_src>
import jax
import jax.numpy as jnp
from jax import lax
from jax.experimental import pallas as pl
from jax.experimental.pallas import tpu as pltpu


# ---------------------------------------------------------------------------
# Fused kernel: input projection -> bidirectional GRU scan -> fc1.
# ---------------------------------------------------------------------------
def _make_kernel(T, BP, H):
    H2, H4 = 2 * H, 4 * H

    def kernel(xcat_ref,      # (T*BP, 2D)  rows: [x(t) | x(T-1-t)] per (t, b)
               wih_ref,       # (2D, 6H)    block-diag input weights, both dirs
               bgi_ref,       # (1, 6H)     folded input biases (+ b_hr, b_hz)
               whh_ref,       # (2H, 6H)    block-diag recurrent weights
               bhn_ref,       # (1, 2H)     [b_hn_f | b_hn_b]
               mask_ref,      # (T*BP, 2H)  validity mask, packed/loop layout
               wfcf_ref,      # (H, OUTC)   fc1 weight, forward features
               wfcb_ref,      # (H, OUTC)   fc1 weight, backward features
               bfc_ref,       # (1, OUTC)
               out_ref,       # (T*BP, OUTC) time-major, lane-dense
               gi_ref,        # scratch (T*BP, 6H): packed gate inputs
               hout_ref):     # scratch (T*BP, 2H): packed GRU outputs
        # [hoisted projection] one matmul = every timestep, gate and direction.
        gi_ref[...] = (jnp.dot(xcat_ref[...], wih_ref[...],
                               preferred_element_type=jnp.float32)
                       + bgi_ref[...])

        # [R2] recurrent weights live in vregs for the whole scan.
        # TODO(synk): at H >= 128 keep these in VMEM and reload per step.
        whh = whh_ref[...]            # (2H, 6H)
        bhn = bhn_ref[...]            # (1, 2H)

        def step(t, h):
            # h: (BP, 2H) packed [h_fwd | h_bwd]; ONE MXU matmul per step [R1].
            row0 = pl.multiple_of(t * BP, BP)
            gi = gi_ref[pl.ds(row0, BP), :]              # (BP, 6H) aligned load
            m = mask_ref[pl.ds(row0, BP), :]             # (BP, 2H)
            gh = jnp.dot(h, whh, preferred_element_type=jnp.float32)
            rz = jax.nn.sigmoid(gi[:, :H4] + gh[:, :H4])  # [r_f r_b z_f z_b]
            r = rz[:, :H2]
            z = rz[:, H2:]
            n = jnp.tanh(gi[:, H4:] + r * (gh[:, H4:] + bhn))
            h_new = n + z * (h - n)                      # == (1-z)*n + z*h
            h = h + m * (h_new - h)                      # freeze on padded steps
            hout_ref[pl.ds(row0, BP), :] = h             # full 8-sublane tile [R4]
            return h

        h0 = jnp.zeros((BP, H2), jnp.float32)
        # TODO(synk): switch to partial unroll (unroll=4..8) if T grows large.
        lax.fori_loop(0, T, step, h0, unroll=True)

        # Epilogue [R5]: zero padded positions, un-reverse the backward half to
        # original time order (one-time, off the hot path), then fc1 as two
        # full-size matmuls over the whole buffer.
        hall = hout_ref[...] * mask_ref[...]             # (T*BP, 2H)
        hf = hall[:, :H]
        hb_rev = hall[:, H:]
        hb = jnp.concatenate(
            [hb_rev[(T - 1 - t) * BP:(T - t) * BP, :] for t in range(T)],
            axis=0)
        y = (jnp.dot(hf, wfcf_ref[...], preferred_element_type=jnp.float32)
             + jnp.dot(hb, wfcb_ref[...], preferred_element_type=jnp.float32)
             + bfc_ref[...])
        out_ref[...] = y          # single unmasked, >=128-lane store [R3]

    return kernel


# ---------------------------------------------------------------------------
# Wrapper: one-time weight repacking + mask construction + pallas_call.
# ---------------------------------------------------------------------------
def _split_gates_t(w, H):
    """(3H, X) PyTorch gate-stacked weight -> transposed (X, H) blocks [r,z,n]."""
    return w[:H].T, w[H:2 * H].T, w[2 * H:].T


@jax.jit
def encoder_hattn_forward(params, word_indices, word_mask):
    """word_indices: (B, T) int32, word_mask: (B, T) {0 valid, 1 pad}.
    Returns (B, T, 2*hidden) like the PyTorch module."""
    B, T = word_indices.shape
    D = params["emb"].shape[1]
    H = params["w_hh_f"].shape[1]
    H2 = 2 * H
    BP = ((B + 7) // 8) * 8                 # batch padded to 8-sublane tile [R4]
    OUTC = ((H2 + 127) // 128) * 128        # lane-dense output width [R3]
    TBP = T * BP
    f32 = jnp.float32

    # Embedding gather (XLA), emitted time-major.  Backward inputs are supplied
    # pre-time-reversed so the kernel never shuffles rows.
    # TODO(synk): the gather could become a manual-DMA Pallas gather at scale.
    emb = jnp.take(params["emb"], word_indices, axis=0).astype(f32)   # (B,T,D)
    x_tbd = jnp.transpose(emb, (1, 0, 2))                             # (T,B,D)
    pad_b = [(0, 0), (0, BP - B), (0, 0)]
    xf = jnp.pad(x_tbd, pad_b)                                        # (T,BP,D)
    xb = jnp.pad(x_tbd[::-1], pad_b)                                  # reversed
    x_cat = jnp.concatenate([xf.reshape(TBP, D),
                             xb.reshape(TBP, D)], axis=1)             # (TBP,2D)

    # Validity mask in the packed / loop-index layout, built in XLA once [R6]:
    #   forward half : valid iff t < len[b]
    #   backward half: valid iff (T-1-t) < len[b]
    # NOTE: assumes right-padded sequences (same as pack_padded_sequence).
    lengths = jnp.sum((word_mask == 0).astype(jnp.int32), axis=1)     # (B,)
    lens_p = jnp.pad(lengths, (0, BP - B))                            # pad len=0
    ts = jnp.arange(T, dtype=jnp.int32)
    vf = (ts[:, None] < lens_p[None, :]).astype(f32)                  # (T,BP)
    vb = (ts[::-1, None] < lens_p[None, :]).astype(f32)               # (T,BP)
    mask = jnp.concatenate(
        [jnp.broadcast_to(vf[:, :, None], (T, BP, H)),
         jnp.broadcast_to(vb[:, :, None], (T, BP, H))],
        axis=2).reshape(TBP, H2)

    # --- GRU weight packing: gate-major / direction-minor [r_f r_b z_f z_b n_f n_b]
    Zdh = jnp.zeros((D, H), f32)
    Zhh = jnp.zeros((H, H), f32)
    irf, izf, inf_ = _split_gates_t(params["w_ih_f"], H)
    irb, izb, inb = _split_gates_t(params["w_ih_b"], H)
    w_ihcat = jnp.concatenate([
        jnp.concatenate([irf, Zdh, izf, Zdh, inf_, Zdh], axis=1),
        jnp.concatenate([Zdh, irb, Zdh, izb, Zdh, inb], axis=1)],
        axis=0).astype(f32)                                            # (2D,6H)

    hrf, hzf, hnf = _split_gates_t(params["w_hh_f"], H)
    hrb, hzb, hnb = _split_gates_t(params["w_hh_b"], H)
    w_hhbd = jnp.concatenate([
        jnp.concatenate([hrf, Zhh, hzf, Zhh, hnf, Zhh], axis=1),
        jnp.concatenate([Zhh, hrb, Zhh, hzb, Zhh, hnb], axis=1)],
        axis=0).astype(f32)                                            # (2H,6H)

    bif, bhf = params["b_ih_f"], params["b_hh_f"]
    bib, bhb = params["b_ih_b"], params["b_hh_b"]
    b_gi = jnp.concatenate([
        bif[:H] + bhf[:H],           bib[:H] + bhb[:H],
        bif[H:2 * H] + bhf[H:2 * H], bib[H:2 * H] + bhb[H:2 * H],
        bif[2 * H:],                 bib[2 * H:]])[None, :].astype(f32)  # (1,6H)
    b_hn = jnp.concatenate([bhf[2 * H:], bhb[2 * H:]])[None, :].astype(f32)  # (1,2H)

    # fc1 split into fwd/bwd halves and zero-padded to a multiple of 128 lanes.
    wfc_t = params["w_fc"].T.astype(f32)                               # (2H,2H)
    pad_c = [(0, 0), (0, OUTC - H2)]
    wfc_f = jnp.pad(wfc_t[:H], pad_c)                                  # (H,OUTC)
    wfc_b = jnp.pad(wfc_t[H:], pad_c)
    b_fc = jnp.pad(params["b_fc"].astype(f32)[None, :], pad_c)         # (1,OUTC)

    # TODO(synk): at realistic shapes, cast MXU operands (x_cat, w_ihcat, wfc_*)
    # to bf16 for v6e/v7x and shard the batch over a leading "parallel" grid
    # axis so v7x's second TensorCore is used; at B=2 that split would only
    # serialize the scan twice on single-TC chips, so grid stays (1,).
    kernel = _make_kernel(T, BP, H)
    grid_spec = pltpu.PrefetchScalarGridSpec(
        num_scalar_prefetch=0,
        grid=(1,),
        in_specs=[
            pl.BlockSpec((TBP, 2 * D), lambda i: (0, 0)),
            pl.BlockSpec((2 * D, 6 * H), lambda i: (0, 0)),
            pl.BlockSpec((1, 6 * H), lambda i: (0, 0)),
            pl.BlockSpec((H2, 6 * H), lambda i: (0, 0)),
            pl.BlockSpec((1, H2), lambda i: (0, 0)),
            pl.BlockSpec((TBP, H2), lambda i: (0, 0)),
            pl.BlockSpec((H, OUTC), lambda i: (0, 0)),
            pl.BlockSpec((H, OUTC), lambda i: (0, 0)),
            pl.BlockSpec((1, OUTC), lambda i: (0, 0)),
        ],
        out_specs=pl.BlockSpec((TBP, OUTC), lambda i: (0, 0)),
        scratch_shapes=[
            pltpu.VMEM((TBP, 6 * H), jnp.float32),   # packed gate inputs [R7]
            pltpu.VMEM((TBP, H2), jnp.float32),      # packed GRU outputs [R7]
        ],
    )

    out = pl.pallas_call(
        kernel,
        out_shape=jax.ShapeDtypeStruct((TBP, OUTC), jnp.float32),
        grid_spec=grid_spec,
        compiler_params=pltpu.CompilerParams(
            dimension_semantics=("arbitrary",)),
    )(x_cat, w_ihcat, b_gi, w_hhbd, b_hn, mask, wfc_f, wfc_b, b_fc)

    # Time-major -> (B, T, 2H); tiny XLA reshape/slice/transpose (review-allowed).
    y = out[:, :H2].reshape(T, BP, H2)[:, :B, :]
    return jnp.transpose(y, (1, 0, 2))


# ---------------------------------------------------------------------------
# Pure-JAX reference mirroring the PyTorch module semantics (for validation).
# ---------------------------------------------------------------------------
def reference_forward(params, word_indices, word_mask):
    B, T = word_indices.shape
    H = params["w_hh_f"].shape[1]
    f32 = jnp.float32
    emb = jnp.take(params["emb"], word_indices, axis=0).astype(f32)    # (B,T,D)
    x_tbd = jnp.transpose(emb, (1, 0, 2))                              # (T,B,D)
    lengths = jnp.sum((word_mask == 0).astype(jnp.int32), axis=1)

    def run_dir(w_ih, w_hh, b_ih, b_hh, reverse):
        def step(h, inp):
            x_t, valid = inp                                 # (B,D), (B,1) bool
            gi = x_t @ w_ih.T + b_ih
            gh = h @ w_hh.T + b_hh
            r = jax.nn.sigmoid(gi[:, :H] + gh[:, :H])
            z = jax.nn.sigmoid(gi[:, H:2 * H] + gh[:, H:2 * H])
            n = jnp.tanh(gi[:, 2 * H:] + r * gh[:, 2 * H:])
            h_new = (1.0 - z) * n + z * h
            h = jnp.where(valid, h_new, h)
            return h, jnp.where(valid, h, 0.0)

        ts = jnp.arange(T)
        valid = (ts[:, None] < lengths[None, :])[:, :, None]           # (T,B,1)
        xs, vs = (x_tbd[::-1], valid[::-1]) if reverse else (x_tbd, valid)
        h0 = jnp.zeros((B, H), f32)
        _, outs = lax.scan(step, h0, (xs, vs))
        return outs[::-1] if reverse else outs                         # (T,B,H)

    of = run_dir(params["w_ih_f"], params["w_hh_f"],
                 params["b_ih_f"], params["b_hh_f"], reverse=False)
    ob = run_dir(params["w_ih_b"], params["w_hh_b"],
                 params["b_ih_b"], params["b_hh_b"], reverse=True)
    hcat = jnp.concatenate([of, ob], axis=-1)                          # (T,B,2H)
    y = hcat @ params["w_fc"].T + params["b_fc"]
    return jnp.transpose(y, (1, 0, 2))                                 # (B,T,2H)


# ---------------------------------------------------------------------------
# Deterministic synthetic parameters (PyTorch layouts).
# ---------------------------------------------------------------------------
def init_params(key, vocab_size, emb_dim, hidden):
    ks = jax.random.split(key, 12)
    s = 0.1

    def rnd(k, shape):
        return jax.random.normal(k, shape, jnp.float32) * s

    return {
        "emb": rnd(ks[0], (vocab_size, emb_dim)),
        # GRU forward direction (PyTorch layout: (3H, in) / (3H, H), gates [r,z,n])
        "w_ih_f": rnd(ks[1], (3 * hidden, emb_dim)),
        "w_hh_f": rnd(ks[2], (3 * hidden, hidden)),
        "b_ih_f": rnd(ks[3], (3 * hidden,)),
        "b_hh_f": rnd(ks[4], (3 * hidden,)),
        # GRU backward direction
        "w_ih_b": rnd(ks[5], (3 * hidden, emb_dim)),
        "w_hh_b": rnd(ks[6], (3 * hidden, hidden)),
        "b_ih_b": rnd(ks[7], (3 * hidden,)),
        "b_hh_b": rnd(ks[8], (3 * hidden,)),
        # fc1: Linear(2H -> 2H)
        "w_fc": rnd(ks[9], (2 * hidden, 2 * hidden)),
        "b_fc": rnd(ks[10], (2 * hidden,)),
    }


if __name__ == "__main__":
    # Small config: vocab=50, glove_embedding_size=32, encoder_hidden_size=32,
    # num_layers=1, dropout=0.0, rnn_type=GRU, concat_layers=False.
    VOCAB, EMB, HID = 50, 32, 32
    B, T = 2, 8

    key = jax.random.PRNGKey(0)
    pkey, ikey = jax.random.split(key)
    params = init_params(pkey, VOCAB, EMB, HID)

    word_indices = jax.random.randint(ikey, (B, T), 0, VOCAB, dtype=jnp.int32)
    # mask: 0 = valid token, 1 = padding (right-padded; lengths 8 and 5)
    word_mask = jnp.array([[0, 0, 0, 0, 0, 0, 0, 0],
                           [0, 0, 0, 0, 0, 1, 1, 1]], dtype=jnp.int32)

    out = encoder_hattn_forward(params, word_indices, word_mask)
    out = jax.block_until_ready(out)
    assert out.shape == (B, T, 2 * HID)
    assert bool(jnp.all(jnp.isfinite(out)))

    ref = reference_forward(params, word_indices, word_mask)
    err = float(jnp.max(jnp.abs(out - ref)))
    assert err < 1e-3, f"max abs error vs reference: {err}"
    print("KERNEL_OK")
</pallas_src>

<mosaic_0001>
module attributes {stable_mosaic.version = 11 : i64} {
  func.func @kernel(%arg0: i32, %arg1: memref<64x64xf32, #tpu.memory_space<vmem>>, %arg2: memref<64x192xf32, #tpu.memory_space<vmem>>, %arg3: memref<1x192xf32, #tpu.memory_space<vmem>>, %arg4: memref<64x192xf32, #tpu.memory_space<vmem>>, %arg5: memref<1x64xf32, #tpu.memory_space<vmem>>, %arg6: memref<64x64xf32, #tpu.memory_space<vmem>>, %arg7: memref<32x128xf32, #tpu.memory_space<vmem>>, %arg8: memref<32x128xf32, #tpu.memory_space<vmem>>, %arg9: memref<1x128xf32, #tpu.memory_space<vmem>>, %arg10: memref<64x128xf32, #tpu.memory_space<vmem>>, %arg11: memref<64x192xf32, #tpu.memory_space<vmem>>, %arg12: memref<64x64xf32, #tpu.memory_space<vmem>>) attributes {dimension_semantics = [#tpu.dimension_semantics<arbitrary>], iteration_bounds = array<i64: 1>, scalar_prefetch = 0 : i64, scratch_operands = 2 : i64, tpu.core_type = #tpu.core_type<tc>, window_params = [{pipeline_mode = #tpu.pipeline_mode<synchronous>, transform_indices = @transform_0, window_bounds = array<i64: 64, 64>}, {pipeline_mode = #tpu.pipeline_mode<synchronous>, transform_indices = @transform_1, window_bounds = array<i64: 64, 192>}, {pipeline_mode = #tpu.pipeline_mode<synchronous>, transform_indices = @transform_2, window_bounds = array<i64: 1, 192>}, {pipeline_mode = #tpu.pipeline_mode<synchronous>, transform_indices = @transform_3, window_bounds = array<i64: 64, 192>}, {pipeline_mode = #tpu.pipeline_mode<synchronous>, transform_indices = @transform_4, window_bounds = array<i64: 1, 64>}, {pipeline_mode = #tpu.pipeline_mode<synchronous>, transform_indices = @transform_5, window_bounds = array<i64: 64, 64>}, {pipeline_mode = #tpu.pipeline_mode<synchronous>, transform_indices = @transform_6, window_bounds = array<i64: 32, 128>}, {pipeline_mode = #tpu.pipeline_mode<synchronous>, transform_indices = @transform_7, window_bounds = array<i64: 32, 128>}, {pipeline_mode = #tpu.pipeline_mode<synchronous>, transform_indices = @transform_8, window_bounds = array<i64: 1, 128>}, {pipeline_mode = #tpu.pipeline_mode<synchronous>, transform_indices = @transform_9, window_bounds = array<i64: 64, 128>}]} {
    %c0 = arith.constant 0 : index
    %c0_0 = arith.constant 0 : index
    %0 = vector.load %arg1[%c0, %c0_0] : memref<64x64xf32, #tpu.memory_space<vmem>>, vector<64x64xf32>
    %c0_1 = arith.constant 0 : index
    %c0_2 = arith.constant 0 : index
    %1 = vector.load %arg2[%c0_1, %c0_2] : memref<64x192xf32, #tpu.memory_space<vmem>>, vector<64x192xf32>
    %cst = arith.constant dense<0.000000e+00> : vector<64x192xf32>
    %2 = tpu.matmul %0, %1, %cst {dimension_numbers = #tpu.dot_dimension_numbers<[1], [0], [0], [1], [0, 0, 1, 1], [], []>} : vector<64x64xf32>, vector<64x192xf32>, vector<64x192xf32> -> vector<64x192xf32>
    %c0_3 = arith.constant 0 : index
    %c0_4 = arith.constant 0 : index
    %3 = vector.load %arg3[%c0_3, %c0_4] : memref<1x192xf32, #tpu.memory_space<vmem>>, vector<1x192xf32>
    %4 = vector.broadcast %3 : vector<1x192xf32> to vector<64x192xf32>
    %5 = arith.addf %2, %4 : vector<64x192xf32>
    %c0_5 = arith.constant 0 : index
    %c0_6 = arith.constant 0 : index
    %6 = vector.load %arg11[%c0_5, %c0_6] : memref<64x192xf32, #tpu.memory_space<vmem>>, vector<64x192xf32>
    tpu.vector_store %arg11[%c0_5, %c0_6], %5 {strides = array<i32>} : memref<64x192xf32, #tpu.memory_space<vmem>>, vector<64x192xf32>,
    %c0_7 = arith.constant 0 : index
    %c0_8 = arith.constant 0 : index
    %7 = vector.load %arg4[%c0_7, %c0_8] : memref<64x192xf32, #tpu.memory_space<vmem>>, vector<64x192xf32>
    %c0_9 = arith.constant 0 : index
    %c0_10 = arith.constant 0 : index
    %8 = vector.load %arg5[%c0_9, %c0_10] : memref<1x64xf32, #tpu.memory_space<vmem>>, vector<1x64xf32>
    %cst_11 = arith.constant 0.000000e+00 : f32
    %9 = vector.broadcast %cst_11 : f32 to vector<8x64xf32>
    %c0_i32 = arith.constant 0 : i32
    %c8_i32 = arith.constant 8 : i32
    %10 = arith.muli %c0_i32, %c8_i32 : i32
    %11 = tpu.assume_multiple %10, 8 : i32
    %12 = arith.index_cast %11 : i32 to index
    %c0_12 = arith.constant 0 : index
    %13 = vector.load %arg11[%12, %c0_12] : memref<64x192xf32, #tpu.memory_space<vmem>>, vector<8x192xf32>
    %14 = arith.index_cast %11 : i32 to index
    %c0_13 = arith.constant 0 : index
    %15 = vector.load %arg6[%14, %c0_13] : memref<64x64xf32, #tpu.memory_space<vmem>>, vector<8x64xf32>
    %cst_14 = arith.constant dense<0.000000e+00> : vector<8x192xf32>
    %16 = tpu.matmul %9, %7, %cst_14 {dimension_numbers = #tpu.dot_dimension_numbers<[1], [0], [0], [1], [0, 0, 1, 1], [], []>} : vector<8x64xf32>, vector<64x192xf32>, vector<8x192xf32> -> vector<8x192xf32>
    %17 = vector.extract_strided_slice %13 {offsets = [0, 0], sizes = [8, 128], strides = [1, 1]} : vector<8x192xf32> to vector<8x128xf32>
    %18 = vector.extract_strided_slice %16 {offsets = [0, 0], sizes = [8, 128], strides = [1, 1]} : vector<8x192xf32> to vector<8x128xf32>
    %19 = arith.addf %17, %18 : vector<8x128xf32>
    %20 = arith.negf %19 : vector<8x128xf32>
    %21 = math.exp %20 : vector<8x128xf32>
    %cst_15 = arith.constant 1.000000e+00 : f32
    %22 = vector.broadcast %cst_15 : f32 to vector<8x128xf32>
    %23 = arith.addf %22, %21 : vector<8x128xf32>
    %24 = arith.divf %22, %23 : vector<8x128xf32>
    %25 = vector.extract_strided_slice %24 {offsets = [0, 0], sizes = [8, 64], strides = [1, 1]} : vector<8x128xf32> to vector<8x64xf32>
    %26 = vector.extract_strided_slice %24 {offsets = [0, 64], sizes = [8, 64], strides = [1, 1]} : vector<8x128xf32> to vector<8x64xf32>
    %27 = vector.extract_strided_slice %13 {offsets = [0, 128], sizes = [8, 64], strides = [1, 1]} : vector<8x192xf32> to vector<8x64xf32>
    %28 = vector.extract_strided_slice %16 {offsets = [0, 128], sizes = [8, 64], strides = [1, 1]} : vector<8x192xf32> to vector<8x64xf32>
    %29 = vector.broadcast %8 : vector<1x64xf32> to vector<8x64xf32>
    %30 = arith.addf %28, %29 : vector<8x64xf32>
    %31 = arith.mulf %25, %30 : vector<8x64xf32>
    %32 = arith.addf %27, %31 : vector<8x64xf32>
    %33 = math.tanh %32 : vector<8x64xf32>
    %34 = arith.subf %9, %33 : vector<8x64xf32>
    %35 = arith.mulf %26, %34 : vector<8x64xf32>
    %36 = arith.addf %33, %35 : vector<8x64xf32>
    %37 = arith.subf %36, %9 : vector<8x64xf32>
    %38 = arith.mulf %15, %37 : vector<8x64xf32>
    %39 = arith.addf %9, %38 : vector<8x64xf32>
    %40 = arith.index_cast %11 : i32 to index
    %c0_16 = arith.constant 0 : index
    %41 = vector.load %arg12[%40, %c0_16] : memref<64x64xf32, #tpu.memory_space<vmem>>, vector<8x64xf32>
    tpu.vector_store %arg12[%40, %c0_16], %39 {strides = array<i32>} : memref<64x64xf32, #tpu.memory_space<vmem>>, vector<8x64xf32>,
    %c1_i32 = arith.constant 1 : i32
    %c8_i32_17 = arith.constant 8 : i32
    %42 = arith.muli %c1_i32, %c8_i32_17 : i32
    %43 = tpu.assume_multiple %42, 8 : i32
    %44 = arith.index_cast %43 : i32 to index
    %c0_18 = arith.constant 0 : index
    %45 = vector.load %arg11[%44, %c0_18] : memref<64x192xf32, #tpu.memory_space<vmem>>, vector<8x192xf32>
    %46 = arith.index_cast %43 : i32 to index
    %c0_19 = arith.constant 0 : index
    %47 = vector.load %arg6[%46, %c0_19] : memref<64x64xf32, #tpu.memory_space<vmem>>, vector<8x64xf32>
    %cst_20 = arith.constant dense<0.000000e+00> : vector<8x192xf32>
    %48 = tpu.matmul %39, %7, %cst_20 {dimension_numbers = #tpu.dot_dimension_numbers<[1], [0], [0], [1], [0, 0, 1, 1], [], []>} : vector<8x64xf32>, vector<64x192xf32>, vector<8x192xf32> -> vector<8x192xf32>
    %49 = vector.extract_strided_slice %45 {offsets = [0, 0], sizes = [8, 128], strides = [1, 1]} : vector<8x192xf32> to vector<8x128xf32>
    %50 = vector.extract_strided_slice %48 {offsets = [0, 0], sizes = [8, 128], strides = [1, 1]} : vector<8x192xf32> to vector<8x128xf32>
    %51 = arith.addf %49, %50 : vector<8x128xf32>
    %52 = arith.negf %51 : vector<8x128xf32>
    %53 = math.exp %52 : vector<8x128xf32>
    %cst_21 = arith.constant 1.000000e+00 : f32
    %54 = vector.broadcast %cst_21 : f32 to vector<8x128xf32>
    %55 = arith.addf %54, %53 : vector<8x128xf32>
    %56 = arith.divf %54, %55 : vector<8x128xf32>
    %57 = vector.extract_strided_slice %56 {offsets = [0, 0], sizes = [8, 64], strides = [1, 1]} : vector<8x128xf32> to vector<8x64xf32>
    %58 = vector.extract_strided_slice %56 {offsets = [0, 64], sizes = [8, 64], strides = [1, 1]} : vector<8x128xf32> to vector<8x64xf32>
    %59 = vector.extract_strided_slice %45 {offsets = [0, 128], sizes = [8, 64], strides = [1, 1]} : vector<8x192xf32> to vector<8x64xf32>
    %60 = vector.extract_strided_slice %48 {offsets = [0, 128], sizes = [8, 64], strides = [1, 1]} : vector<8x192xf32> to vector<8x64xf32>
    %61 = vector.broadcast %8 : vector<1x64xf32> to vector<8x64xf32>
    %62 = arith.addf %60, %61 : vector<8x64xf32>
    %63 = arith.mulf %57, %62 : vector<8x64xf32>
    %64 = arith.addf %59, %63 : vector<8x64xf32>
    %65 = math.tanh %64 : vector<8x64xf32>
    %66 = arith.subf %39, %65 : vector<8x64xf32>
    %67 = arith.mulf %58, %66 : vector<8x64xf32>
    %68 = arith.addf %65, %67 : vector<8x64xf32>
    %69 = arith.subf %68, %39 : vector<8x64xf32>
    %70 = arith.mulf %47, %69 : vector<8x64xf32>
    %71 = arith.addf %39, %70 : vector<8x64xf32>
    %72 = arith.index_cast %43 : i32 to index
    %c0_22 = arith.constant 0 : index
    %73 = vector.load %arg12[%72, %c0_22] : memref<64x64xf32, #tpu.memory_space<vmem>>, vector<8x64xf32>
    tpu.vector_store %arg12[%72, %c0_22], %71 {strides = array<i32>} : memref<64x64xf32, #tpu.memory_space<vmem>>, vector<8x64xf32>,
    %c2_i32 = arith.constant 2 : i32
    %c8_i32_23 = arith.constant 8 : i32
    %74 = arith.muli %c2_i32, %c8_i32_23 : i32
    %75 = tpu.assume_multiple %74, 8 : i32
    %76 = arith.index_cast %75 : i32 to index
    %c0_24 = arith.constant 0 : index
    %77 = vector.load %arg11[%76, %c0_24] : memref<64x192xf32, #tpu.memory_space<vmem>>, vector<8x192xf32>
    %78 = arith.index_cast %75 : i32 to index
    %c0_25 = arith.constant 0 : index
    %79 = vector.load %arg6[%78, %c0_25] : memref<64x64xf32, #tpu.memory_space<vmem>>, vector<8x64xf32>
    %cst_26 = arith.constant dense<0.000000e+00> : vector<8x192xf32>
    %80 = tpu.matmul %71, %7, %cst_26 {dimension_numbers = #tpu.dot_dimension_numbers<[1], [0], [0], [1], [0, 0, 1, 1], [], []>} : vector<8x64xf32>, vector<64x192xf32>, vector<8x192xf32> -> vector<8x192xf32>
    %81 = vector.extract_strided_slice %77 {offsets = [0, 0], sizes = [8, 128], strides = [1, 1]} : vector<8x192xf32> to vector<8x128xf32>
    %82 = vector.extract_strided_slice %80 {offsets = [0, 0], sizes = [8, 128], strides = [1, 1]} : vector<8x192xf32> to vector<8x128xf32>
    %83 = arith.addf %81, %82 : vector<8x128xf32>
    %84 = arith.negf %83 : vector<8x128xf32>
    %85 = math.exp %84 : vector<8x128xf32>
    %cst_27 = arith.constant 1.000000e+00 : f32
    %86 = vector.broadcast %cst_27 : f32 to vector<8x128xf32>
    %87 = arith.addf %86, %85 : vector<8x128xf32>
    %88 = arith.divf %86, %87 : vector<8x128xf32>
    %89 = vector.extract_strided_slice %88 {offsets = [0, 0], sizes = [8, 64], strides = [1, 1]} : vector<8x128xf32> to vector<8x64xf32>
    %90 = vector.extract_strided_slice %88 {offsets = [0, 64], sizes = [8, 64], strides = [1, 1]} : vector<8x128xf32> to vector<8x64xf32>
    %91 = vector.extract_strided_slice %77 {offsets = [0, 128], sizes = [8, 64], strides = [1, 1]} : vector<8x192xf32> to vector<8x64xf32>
    %92 = vector.extract_strided_slice %80 {offsets = [0, 128], sizes = [8, 64], strides = [1, 1]} : vector<8x192xf32> to vector<8x64xf32>
    %93 = vector.broadcast %8 : vector<1x64xf32> to vector<8x64xf32>
    %94 = arith.addf %92, %93 : vector<8x64xf32>
    %95 = arith.mulf %89, %94 : vector<8x64xf32>
    %96 = arith.addf %91, %95 : vector<8x64xf32>
    %97 = math.tanh %96 : vector<8x64xf32>
    %98 = arith.subf %71, %97 : vector<8x64xf32>
    %99 = arith.mulf %90, %98 : vector<8x64xf32>
    %100 = arith.addf %97, %99 : vector<8x64xf32>
    %101 = arith.subf %100, %71 : vector<8x64xf32>
    %102 = arith.mulf %79, %101 : vector<8x64xf32>
    %103 = arith.addf %71, %102 : vector<8x64xf32>
    %104 = arith.index_cast %75 : i32 to index
    %c0_28 = arith.constant 0 : index
    %105 = vector.load %arg12[%104, %c0_28] : memref<64x64xf32, #tpu.memory_space<vmem>>, vector<8x64xf32>
    tpu.vector_store %arg12[%104, %c0_28], %103 {strides = array<i32>} : memref<64x64xf32, #tpu.memory_space<vmem>>, vector<8x64xf32>,
    %c3_i32 = arith.constant 3 : i32
    %c8_i32_29 = arith.constant 8 : i32
    %106 = arith.muli %c3_i32, %c8_i32_29 : i32
    %107 = tpu.assume_multiple %106, 8 : i32
    %108 = arith.index_cast %107 : i32 to index
    %c0_30 = arith.constant 0 : index
    %109 = vector.load %arg11[%108, %c0_30] : memref<64x192xf32, #tpu.memory_space<vmem>>, vector<8x192xf32>
    %110 = arith.index_cast %107 : i32 to index
    %c0_31 = arith.constant 0 : index
    %111 = vector.load %arg6[%110, %c0_31] : memref<64x64xf32, #tpu.memory_space<vmem>>, vector<8x64xf32>
    %cst_32 = arith.constant dense<0.000000e+00> : vector<8x192xf32>
    %112 = tpu.matmul %103, %7, %cst_32 {dimension_numbers = #tpu.dot_dimension_numbers<[1], [0], [0], [1], [0, 0, 1, 1], [], []>} : vector<8x64xf32>, vector<64x192xf32>, vector<8x192xf32> -> vector<8x192xf32>
    %113 = vector.extract_strided_slice %109 {offsets = [0, 0], sizes = [8, 128], strides = [1, 1]} : vector<8x192xf32> to vector<8x128xf32>
    %114 = vector.extract_strided_slice %112 {offsets = [0, 0], sizes = [8, 128], strides = [1, 1]} : vector<8x192xf32> to vector<8x128xf32>
    %115 = arith.addf %113, %114 : vector<8x128xf32>
    %116 = arith.negf %115 : vector<8x128xf32>
    %117 = math.exp %116 : vector<8x128xf32>
    %cst_33 = arith.constant 1.000000e+00 : f32
    %118 = vector.broadcast %cst_33 : f32 to vector<8x128xf32>
    %119 = arith.addf %118, %117 : vector<8x128xf32>
    %120 = arith.divf %118, %119 : vector<8x128xf32>
    %121 = vector.extract_strided_slice %120 {offsets = [0, 0], sizes = [8, 64], strides = [1, 1]} : vector<8x128xf32> to vector<8x64xf32>
    %122 = vector.extract_strided_slice %120 {offsets = [0, 64], sizes = [8, 64], strides = [1, 1]} : vector<8x128xf32> to vector<8x64xf32>
    %123 = vector.extract_strided_slice %109 {offsets = [0, 128], sizes = [8, 64], strides = [1, 1]} : vector<8x192xf32> to vector<8x64xf32>
    %124 = vector.extract_strided_slice %112 {offsets = [0, 128], sizes = [8, 64], strides = [1, 1]} : vector<8x192xf32> to vector<8x64xf32>
    %125 = vector.broadcast %8 : vector<1x64xf32> to vector<8x64xf32>
    %126 = arith.addf %124, %125 : vector<8x64xf32>
    %127 = arith.mulf %121, %126 : vector<8x64xf32>
    %128 = arith.addf %123, %127 : vector<8x64xf32>
    %129 = math.tanh %128 : vector<8x64xf32>
    %130 = arith.subf %103, %129 : vector<8x64xf32>
    %131 = arith.mulf %122, %130 : vector<8x64xf32>
    %132 = arith.addf %129, %131 : vector<8x64xf32>
    %133 = arith.subf %132, %103 : vector<8x64xf32>
    %134 = arith.mulf %111, %133 : vector<8x64xf32>
    %135 = arith.addf %103, %134 : vector<8x64xf32>
    %136 = arith.index_cast %107 : i32 to index
    %c0_34 = arith.constant 0 : index
    %137 = vector.load %arg12[%136, %c0_34] : memref<64x64xf32, #tpu.memory_space<vmem>>, vector<8x64xf32>
    tpu.vector_store %arg12[%136, %c0_34], %135 {strides = array<i32>} : memref<64x64xf32, #tpu.memory_space<vmem>>, vector<8x64xf32>,
    %c4_i32 = arith.constant 4 : i32
    %c8_i32_35 = arith.constant 8 : i32
    %138 = arith.muli %c4_i32, %c8_i32_35 : i32
    %139 = tpu.assume_multiple %138, 8 : i32
    %140 = arith.index_cast %139 : i32 to index
    %c0_36 = arith.constant 0 : index
    %141 = vector.load %arg11[%140, %c0_36] : memref<64x192xf32, #tpu.memory_space<vmem>>, vector<8x192xf32>
    %142 = arith.index_cast %139 : i32 to index
    %c0_37 = arith.constant 0 : index
    %143 = vector.load %arg6[%142, %c0_37] : memref<64x64xf32, #tpu.memory_space<vmem>>, vector<8x64xf32>
    %cst_38 = arith.constant dense<0.000000e+00> : vector<8x192xf32>
    %144 = tpu.matmul %135, %7, %cst_38 {dimension_numbers = #tpu.dot_dimension_numbers<[1], [0], [0], [1], [0, 0, 1, 1], [], []>} : vector<8x64xf32>, vector<64x192xf32>, vector<8x192xf32> -> vector<8x192xf32>
    %145 = vector.extract_strided_slice %141 {offsets = [0, 0], sizes = [8, 128], strides = [1, 1]} : vector<8x192xf32> to vector<8x128xf32>
    %146 = vector.extract_strided_slice %144 {offsets = [0, 0], sizes = [8, 128], strides = [1, 1]} : vector<8x192xf32> to vector<8x128xf32>
    %147 = arith.addf %145, %146 : vector<8x128xf32>
    %148 = arith.negf %147 : vector<8x128xf32>
    %149 = math.exp %148 : vector<8x128xf32>
    %cst_39 = arith.constant 1.000000e+00 : f32
    %150 = vector.broadcast %cst_39 : f32 to vector<8x128xf32>
    %151 = arith.addf %150, %149 : vector<8x128xf32>
    %152 = arith.divf %150, %151 : vector<8x128xf32>
    %153 = vector.extract_strided_slice %152 {offsets = [0, 0], sizes = [8, 64], strides = [1, 1]} : vector<8x128xf32> to vector<8x64xf32>
    %154 = vector.extract_strided_slice %152 {offsets = [0, 64], sizes = [8, 64], strides = [1, 1]} : vector<8x128xf32> to vector<8x64xf32>
    %155 = vector.extract_strided_slice %141 {offsets = [0, 128], sizes = [8, 64], strides = [1, 1]} : vector<8x192xf32> to vector<8x64xf32>
    %156 = vector.extract_strided_slice %144 {offsets = [0, 128], sizes = [8, 64], strides = [1, 1]} : vector<8x192xf32> to vector<8x64xf32>
    %157 = vector.broadcast %8 : vector<1x64xf32> to vector<8x64xf32>
    %158 = arith.addf %156, %157 : vector<8x64xf32>
    %159 = arith.mulf %153, %158 : vector<8x64xf32>
    %160 = arith.addf %155, %159 : vector<8x64xf32>
    %161 = math.tanh %160 : vector<8x64xf32>
    %162 = arith.subf %135, %161 : vector<8x64xf32>
    %163 = arith.mulf %154, %162 : vector<8x64xf32>
    %164 = arith.addf %161, %163 : vector<8x64xf32>
    %165 = arith.subf %164, %135 : vector<8x64xf32>
    %166 = arith.mulf %143, %165 : vector<8x64xf32>
    %167 = arith.addf %135, %166 : vector<8x64xf32>
    %168 = arith.index_cast %139 : i32 to index
    %c0_40 = arith.constant 0 : index
    %169 = vector.load %arg12[%168, %c0_40] : memref<64x64xf32, #tpu.memory_space<vmem>>, vector<8x64xf32>
    tpu.vector_store %arg12[%168, %c0_40], %167 {strides = array<i32>} : memref<64x64xf32, #tpu.memory_space<vmem>>, vector<8x64xf32>,
    %c5_i32 = arith.constant 5 : i32
    %c8_i32_41 = arith.constant 8 : i32
    %170 = arith.muli %c5_i32, %c8_i32_41 : i32
    %171 = tpu.assume_multiple %170, 8 : i32
    %172 = arith.index_cast %171 : i32 to index
    %c0_42 = arith.constant 0 : index
    %173 = vector.load %arg11[%172, %c0_42] : memref<64x192xf32, #tpu.memory_space<vmem>>, vector<8x192xf32>
    %174 = arith.index_cast %171 : i32 to index
    %c0_43 = arith.constant 0 : index
    %175 = vector.load %arg6[%174, %c0_43] : memref<64x64xf32, #tpu.memory_space<vmem>>, vector<8x64xf32>
    %cst_44 = arith.constant dense<0.000000e+00> : vector<8x192xf32>
    %176 = tpu.matmul %167, %7, %cst_44 {dimension_numbers = #tpu.dot_dimension_numbers<[1], [0], [0], [1], [0, 0, 1, 1], [], []>} : vector<8x64xf32>, vector<64x192xf32>, vector<8x192xf32> -> vector<8x192xf32>
    %177 = vector.extract_strided_slice %173 {offsets = [0, 0], sizes = [8, 128], strides = [1, 1]} : vector<8x192xf32> to vector<8x128xf32>
    %178 = vector.extract_strided_slice %176 {offsets = [0, 0], sizes = [8, 128], strides = [1, 1]} : vector<8x192xf32> to vector<8x128xf32>
    %179 = arith.addf %177, %178 : vector<8x128xf32>
    %180 = arith.negf %179 : vector<8x128xf32>
    %181 = math.exp %180 : vector<8x128xf32>
    %cst_45 = arith.constant 1.000000e+00 : f32
    %182 = vector.broadcast %cst_45 : f32 to vector<8x128xf32>
    %183 = arith.addf %182, %181 : vector<8x128xf32>
    %184 = arith.divf %182, %183 : vector<8x128xf32>
    %185 = vector.extract_strided_slice %184 {offsets = [0, 0], sizes = [8, 64], strides = [1, 1]} : vector<8x128xf32> to vector<8x64xf32>
    %186 = vector.extract_strided_slice %184 {offsets = [0, 64], sizes = [8, 64], strides = [1, 1]} : vector<8x128xf32> to vector<8x64xf32>
    %187 = vector.extract_strided_slice %173 {offsets = [0, 128], sizes = [8, 64], strides = [1, 1]} : vector<8x192xf32> to vector<8x64xf32>
    %188 = vector.extract_strided_slice %176 {offsets = [0, 128], sizes = [8, 64], strides = [1, 1]} : vector<8x192xf32> to vector<8x64xf32>
    %189 = vector.broadcast %8 : vector<1x64xf32> to vector<8x64xf32>
    %190 = arith.addf %188, %189 : vector<8x64xf32>
    %191 = arith.mulf %185, %190 : vector<8x64xf32>
    %192 = arith.addf %187, %191 : vector<8x64xf32>
    %193 = math.tanh %192 : vector<8x64xf32>
    %194 = arith.subf %167, %193 : vector<8x64xf32>
    %195 = arith.mulf %186, %194 : vector<8x64xf32>
    %196 = arith.addf %193, %195 : vector<8x64xf32>
    %197 = arith.subf %196, %167 : vector<8x64xf32>
    %198 = arith.mulf %175, %197 : vector<8x64xf32>
    %199 = arith.addf %167, %198 : vector<8x64xf32>
    %200 = arith.index_cast %171 : i32 to index
    %c0_46 = arith.constant 0 : index
    %201 = vector.load %arg12[%200, %c0_46] : memref<64x64xf32, #tpu.memory_space<vmem>>, vector<8x64xf32>
    tpu.vector_store %arg12[%200, %c0_46], %199 {strides = array<i32>} : memref<64x64xf32, #tpu.memory_space<vmem>>, vector<8x64xf32>,
    %c6_i32 = arith.constant 6 : i32
    %c8_i32_47 = arith.constant 8 : i32
    %202 = arith.muli %c6_i32, %c8_i32_47 : i32
    %203 = tpu.assume_multiple %202, 8 : i32
    %204 = arith.index_cast %203 : i32 to index
    %c0_48 = arith.constant 0 : index
    %205 = vector.load %arg11[%204, %c0_48] : memref<64x192xf32, #tpu.memory_space<vmem>>, vector<8x192xf32>
    %206 = arith.index_cast %203 : i32 to index
    %c0_49 = arith.constant 0 : index
    %207 = vector.load %arg6[%206, %c0_49] : memref<64x64xf32, #tpu.memory_space<vmem>>, vector<8x64xf32>
    %cst_50 = arith.constant dense<0.000000e+00> : vector<8x192xf32>
    %208 = tpu.matmul %199, %7, %cst_50 {dimension_numbers = #tpu.dot_dimension_numbers<[1], [0], [0], [1], [0, 0, 1, 1], [], []>} : vector<8x64xf32>, vector<64x192xf32>, vector<8x192xf32> -> vector<8x192xf32>
    %209 = vector.extract_strided_slice %205 {offsets = [0, 0], sizes = [8, 128], strides = [1, 1]} : vector<8x192xf32> to vector<8x128xf32>
    %210 = vector.extract_strided_slice %208 {offsets = [0, 0], sizes = [8, 128], strides = [1, 1]} : vector<8x192xf32> to vector<8x128xf32>
    %211 = arith.addf %209, %210 : vector<8x128xf32>
    %212 = arith.negf %211 : vector<8x128xf32>
    %213 = math.exp %212 : vector<8x128xf32>
    %cst_51 = arith.constant 1.000000e+00 : f32
    %214 = vector.broadcast %cst_51 : f32 to vector<8x128xf32>
    %215 = arith.addf %214, %213 : vector<8x128xf32>
    %216 = arith.divf %214, %215 : vector<8x128xf32>
    %217 = vector.extract_strided_slice %216 {offsets = [0, 0], sizes = [8, 64], strides = [1, 1]} : vector<8x128xf32> to vector<8x64xf32>
    %218 = vector.extract_strided_slice %216 {offsets = [0, 64], sizes = [8, 64], strides = [1, 1]} : vector<8x128xf32> to vector<8x64xf32>
    %219 = vector.extract_strided_slice %205 {offsets = [0, 128], sizes = [8, 64], strides = [1, 1]} : vector<8x192xf32> to vector<8x64xf32>
    %220 = vector.extract_strided_slice %208 {offsets = [0, 128], sizes = [8, 64], strides = [1, 1]} : vector<8x192xf32> to vector<8x64xf32>
    %221 = vector.broadcast %8 : vector<1x64xf32> to vector<8x64xf32>
    %222 = arith.addf %220, %221 : vector<8x64xf32>
    %223 = arith.mulf %217, %222 : vector<8x64xf32>
    %224 = arith.addf %219, %223 : vector<8x64xf32>
    %225 = math.tanh %224 : vector<8x64xf32>
    %226 = arith.subf %199, %225 : vector<8x64xf32>
    %227 = arith.mulf %218, %226 : vector<8x64xf32>
    %228 = arith.addf %225, %227 : vector<8x64xf32>
    %229 = arith.subf %228, %199 : vector<8x64xf32>
    %230 = arith.mulf %207, %229 : vector<8x64xf32>
    %231 = arith.addf %199, %230 : vector<8x64xf32>
    %232 = arith.index_cast %203 : i32 to index
    %c0_52 = arith.constant 0 : index
    %233 = vector.load %arg12[%232, %c0_52] : memref<64x64xf32, #tpu.memory_space<vmem>>, vector<8x64xf32>
    tpu.vector_store %arg12[%232, %c0_52], %231 {strides = array<i32>} : memref<64x64xf32, #tpu.memory_space<vmem>>, vector<8x64xf32>,
    %c7_i32 = arith.constant 7 : i32
    %c8_i32_53 = arith.constant 8 : i32
    %234 = arith.muli %c7_i32, %c8_i32_53 : i32
    %235 = tpu.assume_multiple %234, 8 : i32
    %236 = arith.index_cast %235 : i32 to index
    %c0_54 = arith.constant 0 : index
    %237 = vector.load %arg11[%236, %c0_54] : memref<64x192xf32, #tpu.memory_space<vmem>>, vector<8x192xf32>
    %238 = arith.index_cast %235 : i32 to index
    %c0_55 = arith.constant 0 : index
    %239 = vector.load %arg6[%238, %c0_55] : memref<64x64xf32, #tpu.memory_space<vmem>>, vector<8x64xf32>
    %cst_56 = arith.constant dense<0.000000e+00> : vector<8x192xf32>
    %240 = tpu.matmul %231, %7, %cst_56 {dimension_numbers = #tpu.dot_dimension_numbers<[1], [0], [0], [1], [0, 0, 1, 1], [], []>} : vector<8x64xf32>, vector<64x192xf32>, vector<8x192xf32> -> vector<8x192xf32>
    %241 = vector.extract_strided_slice %237 {offsets = [0, 0], sizes = [8, 128], strides = [1, 1]} : vector<8x192xf32> to vector<8x128xf32>
    %242 = vector.extract_strided_slice %240 {offsets = [0, 0], sizes = [8, 128], strides = [1, 1]} : vector<8x192xf32> to vector<8x128xf32>
    %243 = arith.addf %241, %242 : vector<8x128xf32>
    %244 = arith.negf %243 : vector<8x128xf32>
    %245 = math.exp %244 : vector<8x128xf32>
    %cst_57 = arith.constant 1.000000e+00 : f32
    %246 = vector.broadcast %cst_57 : f32 to vector<8x128xf32>
    %247 = arith.addf %246, %245 : vector<8x128xf32>
    %248 = arith.divf %246, %247 : vector<8x128xf32>
    %249 = vector.extract_strided_slice %248 {offsets = [0, 0], sizes = [8, 64], strides = [1, 1]} : vector<8x128xf32> to vector<8x64xf32>
    %250 = vector.extract_strided_slice %248 {offsets = [0, 64], sizes = [8, 64], strides = [1, 1]} : vector<8x128xf32> to vector<8x64xf32>
    %251 = vector.extract_strided_slice %237 {offsets = [0, 128], sizes = [8, 64], strides = [1, 1]} : vector<8x192xf32> to vector<8x64xf32>
    %252 = vector.extract_strided_slice %240 {offsets = [0, 128], sizes = [8, 64], strides = [1, 1]} : vector<8x192xf32> to vector<8x64xf32>
    %253 = vector.broadcast %8 : vector<1x64xf32> to vector<8x64xf32>
    %254 = arith.addf %252, %253 : vector<8x64xf32>
    %255 = arith.mulf %249, %254 : vector<8x64xf32>
    %256 = arith.addf %251, %255 : vector<8x64xf32>
    %257 = math.tanh %256 : vector<8x64xf32>
    %258 = arith.subf %231, %257 : vector<8x64xf32>
    %259 = arith.mulf %250, %258 : vector<8x64xf32>
    %260 = arith.addf %257, %259 : vector<8x64xf32>
    %261 = arith.subf %260, %231 : vector<8x64xf32>
    %262 = arith.mulf %239, %261 : vector<8x64xf32>
    %263 = arith.addf %231, %262 : vector<8x64xf32>
    %264 = arith.index_cast %235 : i32 to index
    %c0_58 = arith.constant 0 : index
    %265 = vector.load %arg12[%264, %c0_58] : memref<64x64xf32, #tpu.memory_space<vmem>>, vector<8x64xf32>
    tpu.vector_store %arg12[%264, %c0_58], %263 {strides = array<i32>} : memref<64x64xf32, #tpu.memory_space<vmem>>, vector<8x64xf32>,
    %c8_i32_59 = arith.constant 8 : i32
    %c0_60 = arith.constant 0 : index
    %c0_61 = arith.constant 0 : index
    %266 = vector.load %arg12[%c0_60, %c0_61] : memref<64x64xf32, #tpu.memory_space<vmem>>, vector<64x64xf32>
    %c0_62 = arith.constant 0 : index
    %c0_63 = arith.constant 0 : index
    %267 = vector.load %arg6[%c0_62, %c0_63] : memref<64x64xf32, #tpu.memory_space<vmem>>, vector<64x64xf32>
    %268 = arith.mulf %266, %267 : vector<64x64xf32>
    %269 = vector.extract_strided_slice %268 {offsets = [0, 0], sizes = [64, 32], strides = [1, 1]} : vector<64x64xf32> to vector<64x32xf32>
    %270 = vector.extract_strided_slice %268 {offsets = [0, 32], sizes = [64, 32], strides = [1, 1]} : vector<64x64xf32> to vector<64x32xf32>
    %271 = vector.extract_strided_slice %270 {offsets = [56, 0], sizes = [8, 32], strides = [1, 1]} : vector<64x32xf32> to vector<8x32xf32>
    %272 = vector.extract_strided_slice %270 {offsets = [48, 0], sizes = [8, 32], strides = [1, 1]} : vector<64x32xf32> to vector<8x32xf32>
    %273 = vector.extract_strided_slice %270 {offsets = [40, 0], sizes = [8, 32], strides = [1, 1]} : vector<64x32xf32> to vector<8x32xf32>
    %274 = vector.extract_strided_slice %270 {offsets = [32, 0], sizes = [8, 32], strides = [1, 1]} : vector<64x32xf32> to vector<8x32xf32>
    %275 = vector.extract_strided_slice %270 {offsets = [24, 0], sizes = [8, 32], strides = [1, 1]} : vector<64x32xf32> to vector<8x32xf32>
    %276 = vector.extract_strided_slice %270 {offsets = [16, 0], sizes = [8, 32], strides = [1, 1]} : vector<64x32xf32> to vector<8x32xf32>
    %277 = vector.extract_strided_slice %270 {offsets = [8, 0], sizes = [8, 32], strides = [1, 1]} : vector<64x32xf32> to vector<8x32xf32>
    %278 = vector.extract_strided_slice %270 {offsets = [0, 0], sizes = [8, 32], strides = [1, 1]} : vector<64x32xf32> to vector<8x32xf32>
    %279 = tpu.concatenate %271, %272, %273, %274, %275, %276, %277, %278 in 0 : vector<8x32xf32>, vector<8x32xf32>, vector<8x32xf32>, vector<8x32xf32>, vector<8x32xf32>, vector<8x32xf32>, vector<8x32xf32>, vector<8x32xf32> -> vector<64x32xf32>
    %c0_64 = arith.constant 0 : index
    %c0_65 = arith.constant 0 : index
    %280 = vector.load %arg7[%c0_64, %c0_65] : memref<32x128xf32, #tpu.memory_space<vmem>>, vector<32x128xf32>
    %cst_66 = arith.constant dense<0.000000e+00> : vector<64x128xf32>
    %281 = tpu.matmul %269, %280, %cst_66 {dimension_numbers = #tpu.dot_dimension_numbers<[1], [0], [0], [1], [0, 0, 1, 1], [], []>} : vector<64x32xf32>, vector<32x128xf32>, vector<64x128xf32> -> vector<64x128xf32>
    %c0_67 = arith.constant 0 : index
    %c0_68 = arith.constant 0 : index
    %282 = vector.load %arg8[%c0_67, %c0_68] : memref<32x128xf32, #tpu.memory_space<vmem>>, vector<32x128xf32>
    %cst_69 = arith.constant dense<0.000000e+00> : vector<64x128xf32>
    %283 = tpu.matmul %279, %282, %cst_69 {dimension_numbers = #tpu.dot_dimension_numbers<[1], [0], [0], [1], [0, 0, 1, 1], [], []>} : vector<64x32xf32>, vector<32x128xf32>, vector<64x128xf32> -> vector<64x128xf32>
    %284 = arith.addf %281, %283 : vector<64x128xf32>
    %c0_70 = arith.constant 0 : index
    %c0_71 = arith.constant 0 : index
    %285 = vector.load %arg9[%c0_70, %c0_71] : memref<1x128xf32, #tpu.memory_space<vmem>>, vector<1x128xf32>
    %286 = vector.broadcast %285 : vector<1x128xf32> to vector<64x128xf32>
    %287 = arith.addf %284, %286 : vector<64x128xf32>
    %c0_72 = arith.constant 0 : index
    %c0_73 = arith.constant 0 : index
    %288 = vector.load %arg10[%c0_72, %c0_73] : memref<64x128xf32, #tpu.memory_space<vmem>>, vector<64x128xf32>
    tpu.vector_store %arg10[%c0_72, %c0_73], %287 {strides = array<i32>} : memref<64x128xf32, #tpu.memory_space<vmem>>, vector<64x128xf32>,
    return
  }
  func.func @transform_0(%arg0: i32) -> (i32, i32) {
    %c0_i32 = arith.constant 0 : i32
    %c0_i32_0 = arith.constant 0 : i32
    %c0_i32_1 = arith.constant 0 : i32
    return %c0_i32, %c0_i32_0 : i32, i32
  }
  func.func @transform_1(%arg0: i32) -> (i32, i32) {
    %c0_i32 = arith.constant 0 : i32
    %c0_i32_0 = arith.constant 0 : i32
    %c0_i32_1 = arith.constant 0 : i32
    return %c0_i32, %c0_i32_0 : i32, i32
  }
  func.func @transform_2(%arg0: i32) -> (i32, i32) {
    %c0_i32 = arith.constant 0 : i32
    %c0_i32_0 = arith.constant 0 : i32
    %c0_i32_1 = arith.constant 0 : i32
    return %c0_i32, %c0_i32_0 : i32, i32
  }
  func.func @transform_3(%arg0: i32) -> (i32, i32) {
    %c0_i32 = arith.constant 0 : i32
    %c0_i32_0 = arith.constant 0 : i32
    %c0_i32_1 = arith.constant 0 : i32
    return %c0_i32, %c0_i32_0 : i32, i32
  }
  func.func @transform_4(%arg0: i32) -> (i32, i32) {
    %c0_i32 = arith.constant 0 : i32
    %c0_i32_0 = arith.constant 0 : i32
    %c0_i32_1 = arith.constant 0 : i32
    return %c0_i32, %c0_i32_0 : i32, i32
  }
  func.func @transform_5(%arg0: i32) -> (i32, i32) {
    %c0_i32 = arith.constant 0 : i32
    %c0_i32_0 = arith.constant 0 : i32
    %c0_i32_1 = arith.constant 0 : i32
    return %c0_i32, %c0_i32_0 : i32, i32
  }
  func.func @transform_6(%arg0: i32) -> (i32, i32) {
    %c0_i32 = arith.constant 0 : i32
    %c0_i32_0 = arith.constant 0 : i32
    %c0_i32_1 = arith.constant 0 : i32
    return %c0_i32, %c0_i32_0 : i32, i32
  }
  func.func @transform_7(%arg0: i32) -> (i32, i32) {
    %c0_i32 = arith.constant 0 : i32
    %c0_i32_0 = arith.constant 0 : i32
    %c0_i32_1 = arith.constant 0 : i32
    return %c0_i32, %c0_i32_0 : i32, i32
  }
  func.func @transform_8(%arg0: i32) -> (i32, i32) {
    %c0_i32 = arith.constant 0 : i32
    %c0_i32_0 = arith.constant 0 : i32
    %c0_i32_1 = arith.constant 0 : i32
    return %c0_i32, %c0_i32_0 : i32, i32
  }
  func.func @transform_9(%arg0: i32) -> (i32, i32) {
    %c0_i32 = arith.constant 0 : i32
    %c0_i32_0 = arith.constant 0 : i32
    %c0_i32_1 = arith.constant 0 : i32
    return %c0_i32, %c0_i32_0 : i32, i32
  }
}

</mosaic_0001>

<llo_original>
// kernel: encoder_hattn_forward.1
$region0: #{encoder_hattn_forward.1}
  #allocation0 [shape = 'u32[]', space=smem, size = 0x4, offset = 0x4, fixed_abs, tag = 'smem constant byte address 0x4 - core index']
  #allocation1 [shape = 'u32[72,128]{1,0:T(1,128)}', space=vmem, size = 0x9000, scoped, tag = 'internal scratch']
  #allocation2 [shape = 'f32[64,192]{1,0:T(8,128)}', space=vmem, size = 0x10000, scoped, tag = 'scratch operand']
  #allocation3 [shape = 'f32[64,64]{1,0:T(8,128)}', space=vmem, size = 0x8000, scoped, tag = 'scratch operand']
  %s0 = inlined_call_operand.vmem [shape: f32[64,64], index: 0, kind: input, shape index: {}]
  %s1 = inlined_call_operand.vmem [shape: f32[64,192], index: 1, kind: input, shape index: {}]
  %s2 = inlined_call_operand.vmem [shape: f32[1,192], index: 2, kind: input, shape index: {}]
  %s3 = inlined_call_operand.vmem [shape: f32[64,192], index: 3, kind: input, shape index: {}]
  %s4 = inlined_call_operand.vmem [shape: f32[1,64], index: 4, kind: input, shape index: {}]
  %s5 = inlined_call_operand.vmem [shape: f32[64,64], index: 5, kind: input, shape index: {}]
  %s6 = inlined_call_operand.vmem [shape: f32[32,128], index: 6, kind: input, shape index: {}]
  %s7 = inlined_call_operand.vmem [shape: f32[32,128], index: 7, kind: input, shape index: {}]
  %s8 = inlined_call_operand.vmem [shape: f32[1,128], index: 8, kind: input, shape index: {}]
  %s9 = inlined_call_operand.vmem [shape: f32[64,128], index: 9, kind: output, shape index: {}]
  %s10 = sld [smem:[#allocation0]]
  $region46: #{encoder_hattn_forward.1} parent=0
    _
  %s12 = ssub.s32 1, %s10
  %s13 = scalar_select 0, %s12, %s10
  // Predicated region
  $region2: #{encoder_hattn_forward.1} parent=0 // pred_check
    _
  $region3: #{encoder_hattn_forward.1} parent=0 // pred_check_branch
    %15 = sbr.rel (0) target = $region5
  $region4: #{encoder_hattn_forward.1} parent=0 // pred_region
    _
  $region5: #{encoder_hattn_forward.1} parent=0 // pred_fallthru
    _
  // Predicated region
  $region6: #{encoder_hattn_forward.1} parent=0 // pred_check
    _
  $region7: #{encoder_hattn_forward.1} parent=0 // pred_check_branch
    %17 = sbr.rel (0) target = $region9
  $region8: #{encoder_hattn_forward.1} parent=0 // pred_region
    _
  $region9: #{encoder_hattn_forward.1} parent=0 // pred_fallthru
    _
  // Predicated region
  $region10: #{encoder_hattn_forward.1} parent=0 // pred_check
    _
  $region11: #{encoder_hattn_forward.1} parent=0 // pred_check_branch
    %19 = sbr.rel (0) target = $region13
  $region12: #{encoder_hattn_forward.1} parent=0 // pred_region
    _
  $region13: #{encoder_hattn_forward.1} parent=0 // pred_fallthru
    _
  // Predicated region
  $region14: #{encoder_hattn_forward.1} parent=0 // pred_check
    _
  $region15: #{encoder_hattn_forward.1} parent=0 // pred_check_branch
    %21 = sbr.rel (0) target = $region17
  $region16: #{encoder_hattn_forward.1} parent=0 // pred_region
    _
  $region17: #{encoder_hattn_forward.1} parent=0 // pred_fallthru
    _
  // Predicated region
  $region18: #{encoder_hattn_forward.1} parent=0 // pred_check
    _
  $region19: #{encoder_hattn_forward.1} parent=0 // pred_check_branch
    %23 = sbr.rel (0) target = $region21
  $region20: #{encoder_hattn_forward.1} parent=0 // pred_region
    _
  $region21: #{encoder_hattn_forward.1} parent=0 // pred_fallthru
    _
  // Predicated region
  $region22: #{encoder_hattn_forward.1} parent=0 // pred_check
    _
  $region23: #{encoder_hattn_forward.1} parent=0 // pred_check_branch
    %25 = sbr.rel (0) target = $region25
  $region24: #{encoder_hattn_forward.1} parent=0 // pred_region
    _
  $region25: #{encoder_hattn_forward.1} parent=0 // pred_fallthru
    _
  // Predicated region
  $region26: #{encoder_hattn_forward.1} parent=0 // pred_check
    _
  $region27: #{encoder_hattn_forward.1} parent=0 // pred_check_branch
    %27 = sbr.rel (0) target = $region29
  $region28: #{encoder_hattn_forward.1} parent=0 // pred_region
    _
  $region29: #{encoder_hattn_forward.1} parent=0 // pred_fallthru
    _
  // Predicated region
  $region30: #{encoder_hattn_forward.1} parent=0 // pred_check
    _
  $region31: #{encoder_hattn_forward.1} parent=0 // pred_check_branch
    %29 = sbr.rel (0) target = $region33
  $region32: #{encoder_hattn_forward.1} parent=0 // pred_region
    _
  $region33: #{encoder_hattn_forward.1} parent=0 // pred_fallthru
    _
  // Predicated region
  $region34: #{encoder_hattn_forward.1} parent=0 // pred_check
    _
  $region35: #{encoder_hattn_forward.1} parent=0 // pred_check_branch
    %31 = sbr.rel (0) target = $region37
  $region36: #{encoder_hattn_forward.1} parent=0 // pred_region
    _
  $region37: #{encoder_hattn_forward.1} parent=0 // pred_fallthru
    _
  %v32 = vld [vmem:[%s0] sm:$0xff]
  %v33 = vld [vmem:[%s0 + $0x8] sm:$0xff]
  %v34 = vld [vmem:[%s0 + $0x10] sm:$0xff]
  %v35 = vld [vmem:[%s0 + $0x18] sm:$0xff]
  %v36 = vld [vmem:[%s0 + $0x20] sm:$0xff]
  %v37 = vld [vmem:[%s0 + $0x28] sm:$0xff]
  %v38 = vld [vmem:[%s0 + $0x30] sm:$0xff]
  %v39 = vld [vmem:[%s0 + $0x38] sm:$0xff]
  %v40 = vld [vmem:[%s1] sm:$0xff]
  %v41 = vld [vmem:[%s1 + $0x8] sm:$0xff]
  %v42 = vld [vmem:[%s1 + $0x10] sm:$0xff]
  %v43 = vld [vmem:[%s1 + $0x18] sm:$0xff]
  %v44 = vld [vmem:[%s1 + $0x20] sm:$0xff]
  %v45 = vld [vmem:[%s1 + $0x28] sm:$0xff]
  %v46 = vld [vmem:[%s1 + $0x30] sm:$0xff]
  %v47 = vld [vmem:[%s1 + $0x38] sm:$0xff]
  %v48 = vld [vmem:[%s1 + $0x40] sm:$0xff]
  %v49 = vld [vmem:[%s1 + $0x48] sm:$0xff]
  %v50 = vld [vmem:[%s1 + $0x50] sm:$0xff]
  %v51 = vld [vmem:[%s1 + $0x58] sm:$0xff]
  %v52 = vld [vmem:[%s1 + $0x60] sm:$0xff]
  %v53 = vld [vmem:[%s1 + $0x68] sm:$0xff]
  %v54 = vld [vmem:[%s1 + $0x70] sm:$0xff]
  %v55 = vld [vmem:[%s1 + $0x78] sm:$0xff]
  %v56 = vld [vmem:[%s2] sm:$0x3]
  %v58 = vperm.slane %v56, 0
  %v59 = vperm.slane %v56, 1
  %vm62 = vcmask 523264
  %v64 = vsel %vm62, %v32, 0
  %v67 = vsel %vm62, %v33, 0
  %v70 = vsel %vm62, %v34, 0
  %v73 = vsel %vm62, %v35, 0
  %v76 = vsel %vm62, %v36, 0
  %v79 = vsel %vm62, %v37, 0
  %v82 = vsel %vm62, %v38, 0
  %v85 = vsel %vm62, %v39, 0
  %87 = vmatpush.msra.mxu0 0.0
  %88 = vmatpush.msra.mxu0 0.0
  %89 = vmatpush.msra.mxu0 0.0
  %90 = vmatpush.msra.mxu0 0.0
  %91 = vmatpush.msra.mxu0 0.0
  %92 = vmatpush.msra.mxu0 0.0
  %93 = vmatpush.msra.mxu0 0.0
  %94 = vmatpush.msra.mxu0 0.0
  %95 = vmatpush.msra.mxu0 %v54
  %96 = vmatpush.msra.mxu0 %v52
  %97 = vmatpush.msra.mxu0 %v50
  %98 = vmatpush.msra.mxu0 %v48
  %99 = vmatpush.msra.mxu0 %v46
  %100 = vmatpush.msra.mxu0 %v44
  %101 = vmatpush.msra.mxu0 %v42
  %102 = vmatpush.msra.mxu0 %v40
  %103 = vmatmul.f32.gmra.mxu0 %v64
  %v104 = vpop.f32.mrf.mxu0
  %v105 = vadd.f32 %v58, %v104
  %106 = vmatmul.f32.gmra.mxu0 %v67
  %v107 = vpop.f32.mrf.mxu0
  %v108 = vadd.f32 %v58, %v107
  %109 = vmatmul.f32.gmra.mxu0 %v70
  %v110 = vpop.f32.mrf.mxu0
  %v111 = vadd.f32 %v58, %v110
  %112 = vmatmul.f32.gmra.mxu0 %v73
  %v113 = vpop.f32.mrf.mxu0
  %v114 = vadd.f32 %v58, %v113
  %115 = vmatmul.f32.gmra.mxu0 %v76
  %v116 = vpop.f32.mrf.mxu0
  %v117 = vadd.f32 %v58, %v116
  %118 = vmatmul.f32.gmra.mxu0 %v79
  %v119 = vpop.f32.mrf.mxu0
  %v120 = vadd.f32 %v58, %v119
  %121 = vmatmul.f32.gmra.mxu0 %v82
  %v122 = vpop.f32.mrf.mxu0
  %v123 = vadd.f32 %v58, %v122
  %124 = vmatmul.f32.gmra.mxu0 %v85
  %v125 = vpop.f32.mrf.mxu0
  %v126 = vadd.f32 %v58, %v125
  %127 = vdwg.mxu0
  %128 = vmatpush.msra.mxu0 0.0
  %129 = vmatpush.msra.mxu0 0.0
  %130 = vmatpush.msra.mxu0 0.0
  %131 = vmatpush.msra.mxu0 0.0
  %132 = vmatpush.msra.mxu0 0.0
  %133 = vmatpush.msra.mxu0 0.0
  %134 = vmatpush.msra.mxu0 0.0
  %135 = vmatpush.msra.mxu0 0.0
  %136 = vmatpush.msra.mxu0 %v55
  %137 = vmatpush.msra.mxu0 %v53
  %138 = vmatpush.msra.mxu0 %v51
  %139 = vmatpush.msra.mxu0 %v49
  %140 = vmatpush.msra.mxu0 %v47
  %141 = vmatpush.msra.mxu0 %v45
  %142 = vmatpush.msra.mxu0 %v43
  %143 = vmatpush.msra.mxu0 %v41
  %144 = vmatmul.f32.gmra.mxu0 %v64
  %v145 = vpop.f32.mrf.mxu0
  %v146 = vadd.f32 %v59, %v145
  %147 = vmatmul.f32.gmra.mxu0 %v67
  %v148 = vpop.f32.mrf.mxu0
  %v149 = vadd.f32 %v59, %v148
  %150 = vmatmul.f32.gmra.mxu0 %v70
  %v151 = vpop.f32.mrf.mxu0
  %v152 = vadd.f32 %v59, %v151
  %153 = vmatmul.f32.gmra.mxu0 %v73
  %v154 = vpop.f32.mrf.mxu0
  %v155 = vadd.f32 %v59, %v154
  %156 = vmatmul.f32.gmra.mxu0 %v76
  %v157 = vpop.f32.mrf.mxu0
  %v158 = vadd.f32 %v59, %v157
  %159 = vmatmul.f32.gmra.mxu0 %v79
  %v160 = vpop.f32.mrf.mxu0
  %v161 = vadd.f32 %v59, %v160
  %162 = vmatmul.f32.gmra.mxu0 %v82
  %v163 = vpop.f32.mrf.mxu0
  %v164 = vadd.f32 %v59, %v163
  %165 = vmatmul.f32.gmra.mxu0 %v85
  %v166 = vpop.f32.mrf.mxu0
  %v167 = vadd.f32 %v59, %v166
  %168 = vdwg.mxu0
  %169 = vst [vmem:[#allocation2] sm:$0xff] %v105
  %170 = vst.msk [vmem:[#allocation2 + $0x8] sm:$0xff] %vm62, %v146
  %171 = vst [vmem:[#allocation2 + $0x10] sm:$0xff] %v108
  %172 = vst.msk [vmem:[#allocation2 + $0x18] sm:$0xff] %vm62, %v149
  %173 = vst [vmem:[#allocation2 + $0x20] sm:$0xff] %v111
  %174 = vst.msk [vmem:[#allocation2 + $0x28] sm:$0xff] %vm62, %v152
  %175 = vst [vmem:[#allocation2 + $0x30] sm:$0xff] %v114
  %176 = vst.msk [vmem:[#allocation2 + $0x38] sm:$0xff] %vm62, %v155
  %177 = vst [vmem:[#allocation2 + $0x40] sm:$0xff] %v117
  %178 = vst.msk [vmem:[#allocation2 + $0x48] sm:$0xff] %vm62, %v158
  %179 = vst [vmem:[#allocation2 + $0x50] sm:$0xff] %v120
  %180 = vst.msk [vmem:[#allocation2 + $0x58] sm:$0xff] %vm62, %v161
  %181 = vst [vmem:[#allocation2 + $0x60] sm:$0xff] %v123
  %182 = vst.msk [vmem:[#allocation2 + $0x68] sm:$0xff] %vm62, %v164
  %183 = vst [vmem:[#allocation2 + $0x70] sm:$0xff] %v126
  %184 = vst.msk [vmem:[#allocation2 + $0x78] sm:$0xff] %vm62, %v167
  %v185 = vld [vmem:[%s3] sm:$0xff]
  %v186 = vld [vmem:[%s3 + $0x8] sm:$0xff]
  %v187 = vld [vmem:[%s3 + $0x10] sm:$0xff]
  %v188 = vld [vmem:[%s3 + $0x18] sm:$0xff]
  %v189 = vld [vmem:[%s3 + $0x20] sm:$0xff]
  %v190 = vld [vmem:[%s3 + $0x28] sm:$0xff]
  %v191 = vld [vmem:[%s3 + $0x30] sm:$0xff]
  %v192 = vld [vmem:[%s3 + $0x38] sm:$0xff]
  %v193 = vld [vmem:[%s3 + $0x40] sm:$0xff]
  %v194 = vld [vmem:[%s3 + $0x48] sm:$0xff]
  %v195 = vld [vmem:[%s3 + $0x50] sm:$0xff]
  %v196 = vld [vmem:[%s3 + $0x58] sm:$0xff]
  %v197 = vld [vmem:[%s3 + $0x60] sm:$0xff]
  %v198 = vld [vmem:[%s3 + $0x68] sm:$0xff]
  %v199 = vld [vmem:[%s3 + $0x70] sm:$0xff]
  %v200 = vld [vmem:[%s3 + $0x78] sm:$0xff]
  %v201 = vld [vmem:[%s4] sm:$0x1]
  %s202 = smul.u32 0, 2
  %s203 = smul.addr %s202, 8
  %s204 = scalar_lea.vmem [#allocation2], %s203
  %v205 = vld [vmem:[%s204] sm:$0xff]
  %v206 = vld [vmem:[%s204 + $0x8] sm:$0xff]
  %v207 = vld [vmem:[%s5] sm:$0xff]
  %v209 = vsel %vm62, 0.0, 0
  %211 = vmatpush.msra.mxu0 0.0
  %212 = vmatpush.msra.mxu0 0.0
  %213 = vmatpush.msra.mxu0 0.0
  %214 = vmatpush.msra.mxu0 0.0
  %215 = vmatpush.msra.mxu0 0.0
  %216 = vmatpush.msra.mxu0 0.0
  %217 = vmatpush.msra.mxu0 0.0
  %218 = vmatpush.msra.mxu0 0.0
  %219 = vmatpush.msra.mxu0 %v199
  %220 = vmatpush.msra.mxu0 %v197
  %221 = vmatpush.msra.mxu0 %v195
  %222 = vmatpush.msra.mxu0 %v193
  %223 = vmatpush.msra.mxu0 %v191
  %224 = vmatpush.msra.mxu0 %v189
  %225 = vmatpush.msra.mxu0 %v187
  %226 = vmatpush.msra.mxu0 %v185
  %227 = vmatmul.f32.gmra.mxu0 %v209
  %v228 = vpop.f32.mrf.mxu0
  %v229 = vadd.f32 0.0, %v228
  %230 = vdwg.mxu0
  %231 = vmatpush.msra.mxu0 0.0
  %232 = vmatpush.msra.mxu0 0.0
  %233 = vmatpush.msra.mxu0 0.0
  %234 = vmatpush.msra.mxu0 0.0
  %235 = vmatpush.msra.mxu0 0.0
  %236 = vmatpush.msra.mxu0 0.0
  %237 = vmatpush.msra.mxu0 0.0
  %238 = vmatpush.msra.mxu0 0.0
  %239 = vmatpush.msra.mxu0 %v200
  %240 = vmatpush.msra.mxu0 %v198
  %241 = vmatpush.msra.mxu0 %v196
  %242 = vmatpush.msra.mxu0 %v194
  %243 = vmatpush.msra.mxu0 %v192
  %244 = vmatpush.msra.mxu0 %v190
  %245 = vmatpush.msra.mxu0 %v188
  %246 = vmatpush.msra.mxu0 %v186
  %247 = vmatmul.f32.gmra.mxu0 %v209
  %v248 = vpop.f32.mrf.mxu0
  %v249 = vadd.f32 0.0, %v248
  %250 = vdwg.mxu0
  %v251 = vadd.f32 %v205, %v229
  %v252 = vxor.u32 %v251, 2147483648
  %v253 = vmul.f32 %v252, 1.442695
  %v254 = vpow.pop %v253
  %v255 = vadd.f32 %v254, 1.0
  %v256 = vrcp.pop %v255
  %v257 = vmul.f32 %v255, %v256
  %v258 = vsub.f32 1.0, %v257
  %v259 = vmul.f32 %v256, %v258
  %v260 = vadd.f32 %v256, %v259
  %vm261 = vweird.f32 %v255
  %vm262 = vweird.f32 %v256
  %vm263 = vmor %vm261, %vm262
  %v264 = vsel %vm263, %v256, %v260
  %v265 = vand.u32 2147483647, %v255
  %vm266 = vcmp.eq.f32.partialorder %v265, 8.507059e+37
  %v267 = vand.u32 %v255, 2147483648
  %v268 = vor.u32 1.1754944e-38, %v267
  %v269 = vsel %vm266, %v268, %v264
  %v270 = vmul.f32 1.0, %v269
  %v272 = vperm.slane %v201, 0
  %v274 = vadd.f32 %v249, %v272
  %v275 = vmul.f32 %v270, %v274
  %v276 = vadd.f32 %v206, %v275
  %v277 = vtanh.pop %v276
  %v278 = vsub.f32 0.0, %v277
  %280 = vrot.lane.b32.xlu0 %v278, 64
  %v281 = vpop.permute.xlu0 %280
  %v283 = vmul.f32 %v270, %v281
  %285 = vrot.lane.b32.xlu0 %v283, 64
  %v286 = vpop.permute.xlu0 %285
  %v288 = vadd.f32 %v277, %v286
  %v289 = vmul.f32 %v207, %v288
  %v290 = vadd.f32 %v289, 0.0
  %291 = vst.msk [vmem:[#allocation3] sm:$0xff] %vm62, %v290
  %s292 = smul.u32 1, 2
  %s293 = smul.addr %s292, 8
  %s294 = scalar_lea.vmem [#allocation2], %s293
  %v295 = vld [vmem:[%s294] sm:$0xff]
  %v296 = vld [vmem:[%s294 + $0x8] sm:$0xff]
  %s297 = scalar_lea.vmem %s5, 8
  %v298 = vld [vmem:[%s297] sm:$0xff]
  %v300 = vsel %vm62, %v290, 0
  %302 = vmatpush.msra.mxu0 0.0
  %303 = vmatpush.msra.mxu0 0.0
  %304 = vmatpush.msra.mxu0 0.0
  %305 = vmatpush.msra.mxu0 0.0
  %306 = vmatpush.msra.mxu0 0.0
  %307 = vmatpush.msra.mxu0 0.0
  %308 = vmatpush.msra.mxu0 0.0
  %309 = vmatpush.msra.mxu0 0.0
  %310 = vmatpush.msra.mxu0 %v199
  %311 = vmatpush.msra.mxu0 %v197
  %312 = vmatpush.msra.mxu0 %v195
  %313 = vmatpush.msra.mxu0 %v193
  %314 = vmatpush.msra.mxu0 %v191
  %315 = vmatpush.msra.mxu0 %v189
  %316 = vmatpush.msra.mxu0 %v187
  %317 = vmatpush.msra.mxu0 %v185
  %318 = vmatmul.f32.gmra.mxu0 %v300
  %v319 = vpop.f32.mrf.mxu0
  %v320 = vadd.f32 0.0, %v319
  %321 = vdwg.mxu0
  %322 = vmatpush.msra.mxu0 0.0
  %323 = vmatpush.msra.mxu0 0.0
  %324 = vmatpush.msra.mxu0 0.0
  %325 = vmatpush.msra.mxu0 0.0
  %326 = vmatpush.msra.mxu0 0.0
  %327 = vmatpush.msra.mxu0 0.0
  %328 = vmatpush.msra.mxu0 0.0
  %329 = vmatpush.msra.mxu0 0.0
  %330 = vmatpush.msra.mxu0 %v200
  %331 = vmatpush.msra.mxu0 %v198
  %332 = vmatpush.msra.mxu0 %v196
  %333 = vmatpush.msra.mxu0 %v194
  %334 = vmatpush.msra.mxu0 %v192
  %335 = vmatpush.msra.mxu0 %v190
  %336 = vmatpush.msra.mxu0 %v188
  %337 = vmatpush.msra.mxu0 %v186
  %338 = vmatmul.f32.gmra.mxu0 %v300
  %v339 = vpop.f32.mrf.mxu0
  %v340 = vadd.f32 0.0, %v339
  %341 = vdwg.mxu0
  %v342 = vadd.f32 %v295, %v320
  %v343 = vxor.u32 %v342, 2147483648
  %v344 = vmul.f32 %v343, 1.442695
  %v345 = vpow.pop %v344
  %v346 = vadd.f32 %v345, 1.0
  %v347 = vrcp.pop %v346
  %v348 = vmul.f32 %v346, %v347
  %v349 = vsub.f32 1.0, %v348
  %v350 = vmul.f32 %v347, %v349
  %v351 = vadd.f32 %v347, %v350
  %vm352 = vweird.f32 %v346
  %vm353 = vweird.f32 %v347
  %vm354 = vmor %vm352, %vm353
  %v355 = vsel %vm354, %v347, %v351
  %v356 = vand.u32 2147483647, %v346
  %vm357 = vcmp.eq.f32.partialorder %v356, 8.507059e+37
  %v358 = vand.u32 %v346, 2147483648
  %v359 = vor.u32 1.1754944e-38, %v358
  %v360 = vsel %vm357, %v359, %v355
  %v361 = vmul.f32 1.0, %v360
  %v362 = vadd.f32 %v340, %v272
  %v363 = vmul.f32 %v361, %v362
  %v364 = vadd.f32 %v296, %v363
  %v365 = vtanh.pop %v364
  %v366 = vsub.f32 %v290, %v365
  %368 = vrot.lane.b32.xlu0 %v366, 64
  %v369 = vpop.permute.xlu0 %368
  %v371 = vmul.f32 %v361, %v369
  %373 = vrot.lane.b32.xlu0 %v371, 64
  %v374 = vpop.permute.xlu0 %373
  %v376 = vadd.f32 %v365, %v374
  %v377 = vsub.f32 %v376, %v290
  %v378 = vmul.f32 %v298, %v377
  %v379 = vadd.f32 %v290, %v378
  %s380 = scalar_lea.vmem [#allocation3], 8
  %381 = vst.msk [vmem:[%s380] sm:$0xff] %vm62, %v379
  %s382 = smul.u32 2, 2
  %s383 = smul.addr %s382, 8
  %s384 = scalar_lea.vmem [#allocation2], %s383
  %v385 = vld [vmem:[%s384] sm:$0xff]
  %v386 = vld [vmem:[%s384 + $0x8] sm:$0xff]
  %s387 = scalar_lea.vmem %s5, 16
  %v388 = vld [vmem:[%s387] sm:$0xff]
  %v390 = vsel %vm62, %v379, 0
  %392 = vmatpush.msra.mxu0 0.0
  %393 = vmatpush.msra.mxu0 0.0
  %394 = vmatpush.msra.mxu0 0.0
  %395 = vmatpush.msra.mxu0 0.0
  %396 = vmatpush.msra.mxu0 0.0
  %397 = vmatpush.msra.mxu0 0.0
  %398 = vmatpush.msra.mxu0 0.0
  %399 = vmatpush.msra.mxu0 0.0
  %400 = vmatpush.msra.mxu0 %v199
  %401 = vmatpush.msra.mxu0 %v197
  %402 = vmatpush.msra.mxu0 %v195
  %403 = vmatpush.msra.mxu0 %v193
  %404 = vmatpush.msra.mxu0 %v191
  %405 = vmatpush.msra.mxu0 %v189
  %406 = vmatpush.msra.mxu0 %v187
  %407 = vmatpush.msra.mxu0 %v185
  %408 = vmatmul.f32.gmra.mxu0 %v390
  %v409 = vpop.f32.mrf.mxu0
  %v410 = vadd.f32 0.0, %v409
  %411 = vdwg.mxu0
  %412 = vmatpush.msra.mxu0 0.0
  %413 = vmatpush.msra.mxu0 0.0
  %414 = vmatpush.msra.mxu0 0.0
  %415 = vmatpush.msra.mxu0 0.0
  %416 = vmatpush.msra.mxu0 0.0
  %417 = vmatpush.msra.mxu0 0.0
  %418 = vmatpush.msra.mxu0 0.0
  %419 = vmatpush.msra.mxu0 0.0
  %420 = vmatpush.msra.mxu0 %v200
  %421 = vmatpush.msra.mxu0 %v198
  %422 = vmatpush.msra.mxu0 %v196
  %423 = vmatpush.msra.mxu0 %v194
  %424 = vmatpush.msra.mxu0 %v192
  %425 = vmatpush.msra.mxu0 %v190
  %426 = vmatpush.msra.mxu0 %v188
  %427 = vmatpush.msra.mxu0 %v186
  %428 = vmatmul.f32.gmra.mxu0 %v390
  %v429 = vpop.f32.mrf.mxu0
  %v430 = vadd.f32 0.0, %v429
  %431 = vdwg.mxu0
  %v432 = vadd.f32 %v385, %v410
  %v433 = vxor.u32 %v432, 2147483648
  %v434 = vmul.f32 %v433, 1.442695
  %v435 = vpow.pop %v434
  %v436 = vadd.f32 %v435, 1.0
  %v437 = vrcp.pop %v436
  %v438 = vmul.f32 %v436, %v437
  %v439 = vsub.f32 1.0, %v438
  %v440 = vmul.f32 %v437, %v439
  %v441 = vadd.f32 %v437, %v440
  %vm442 = vweird.f32 %v436
  %vm443 = vweird.f32 %v437
  %vm444 = vmor %vm442, %vm443
  %v445 = vsel %vm444, %v437, %v441
  %v446 = vand.u32 2147483647, %v436
  %vm447 = vcmp.eq.f32.partialorder %v446, 8.507059e+37
  %v448 = vand.u32 %v436, 2147483648
  %v449 = vor.u32 1.1754944e-38, %v448
  %v450 = vsel %vm447, %v449, %v445
  %v451 = vmul.f32 1.0, %v450
  %v452 = vadd.f32 %v430, %v272
  %v453 = vmul.f32 %v451, %v452
  %v454 = vadd.f32 %v386, %v453
  %v455 = vtanh.pop %v454
  %v456 = vsub.f32 %v379, %v455
  %458 = vrot.lane.b32.xlu0 %v456, 64
  %v459 = vpop.permute.xlu0 %458
  %v461 = vmul.f32 %v451, %v459
  %463 = vrot.lane.b32.xlu0 %v461, 64
  %v464 = vpop.permute.xlu0 %463
  %v466 = vadd.f32 %v455, %v464
  %v467 = vsub.f32 %v466, %v379
  %v468 = vmul.f32 %v388, %v467
  %v469 = vadd.f32 %v379, %v468
  %s470 = scalar_lea.vmem [#allocation3], 16
  %471 = vst.msk [vmem:[%s470] sm:$0xff] %vm62, %v469
  %s472 = smul.u32 3, 2
  %s473 = smul.addr %s472, 8
  %s474 = scalar_lea.vmem [#allocation2], %s473
  %v475 = vld [vmem:[%s474] sm:$0xff]
  %v476 = vld [vmem:[%s474 + $0x8] sm:$0xff]
  %s477 = scalar_lea.vmem %s5, 24
  %v478 = vld [vmem:[%s477] sm:$0xff]
  %v480 = vsel %vm62, %v469, 0
  %482 = vmatpush.msra.mxu0 0.0
  %483 = vmatpush.msra.mxu0 0.0
  %484 = vmatpush.msra.mxu0 0.0
  %485 = vmatpush.msra.mxu0 0.0
  %486 = vmatpush.msra.mxu0 0.0
  %487 = vmatpush.msra.mxu0 0.0
  %488 = vmatpush.msra.mxu0 0.0
  %489 = vmatpush.msra.mxu0 0.0
  %490 = vmatpush.msra.mxu0 %v199
  %491 = vmatpush.msra.mxu0 %v197
  %492 = vmatpush.msra.mxu0 %v195
  %493 = vmatpush.msra.mxu0 %v193
  %494 = vmatpush.msra.mxu0 %v191
  %495 = vmatpush.msra.mxu0 %v189
  %496 = vmatpush.msra.mxu0 %v187
  %497 = vmatpush.msra.mxu0 %v185
  %498 = vmatmul.f32.gmra.mxu0 %v480
  %v499 = vpop.f32.mrf.mxu0
  %v500 = vadd.f32 0.0, %v499
  %501 = vdwg.mxu0
  %502 = vmatpush.msra.mxu0 0.0
  %503 = vmatpush.msra.mxu0 0.0
  %504 = vmatpush.msra.mxu0 0.0
  %505 = vmatpush.msra.mxu0 0.0
  %506 = vmatpush.msra.mxu0 0.0
  %507 = vmatpush.msra.mxu0 0.0
  %508 = vmatpush.msra.mxu0 0.0
  %509 = vmatpush.msra.mxu0 0.0
  %510 = vmatpush.msra.mxu0 %v200
  %511 = vmatpush.msra.mxu0 %v198
  %512 = vmatpush.msra.mxu0 %v196
  %513 = vmatpush.msra.mxu0 %v194
  %514 = vmatpush.msra.mxu0 %v192
  %515 = vmatpush.msra.mxu0 %v190
  %516 = vmatpush.msra.mxu0 %v188
  %517 = vmatpush.msra.mxu0 %v186
  %518 = vmatmul.f32.gmra.mxu0 %v480
  %v519 = vpop.f32.mrf.mxu0
  %v520 = vadd.f32 0.0, %v519
  %521 = vdwg.mxu0
  %v522 = vadd.f32 %v475, %v500
  %v523 = vxor.u32 %v522, 2147483648
  %v524 = vmul.f32 %v523, 1.442695
  %v525 = vpow.pop %v524
  %v526 = vadd.f32 %v525, 1.0
  %v527 = vrcp.pop %v526
  %v528 = vmul.f32 %v526, %v527
  %v529 = vsub.f32 1.0, %v528
  %v530 = vmul.f32 %v527, %v529
  %v531 = vadd.f32 %v527, %v530
  %vm532 = vweird.f32 %v526
  %vm533 = vweird.f32 %v527
  %vm534 = vmor %vm532, %vm533
  %v535 = vsel %vm534, %v527, %v531
  %v536 = vand.u32 2147483647, %v526
  %vm537 = vcmp.eq.f32.partialorder %v536, 8.507059e+37
  %v538 = vand.u32 %v526, 2147483648
  %v539 = vor.u32 1.1754944e-38, %v538
  %v540 = vsel %vm537, %v539, %v535
  %v541 = vmul.f32 1.0, %v540
  %v542 = vadd.f32 %v520, %v272
  %v543 = vmul.f32 %v541, %v542
  %v544 = vadd.f32 %v476, %v543
  %v545 = vtanh.pop %v544
  %v546 = vsub.f32 %v469, %v545
  %548 = vrot.lane.b32.xlu0 %v546, 64
  %v549 = vpop.permute.xlu0 %548
  %v551 = vmul.f32 %v541, %v549
  %553 = vrot.lane.b32.xlu0 %v551, 64
  %v554 = vpop.permute.xlu0 %553
  %v556 = vadd.f32 %v545, %v554
  %v557 = vsub.f32 %v556, %v469
  %v558 = vmul.f32 %v478, %v557
  %v559 = vadd.f32 %v469, %v558
  %s560 = scalar_lea.vmem [#allocation3], 24
  %561 = vst.msk [vmem:[%s560] sm:$0xff] %vm62, %v559
  %s562 = smul.u32 4, 2
  %s563 = smul.addr %s562, 8
  %s564 = scalar_lea.vmem [#allocation2], %s563
  %v565 = vld [vmem:[%s564] sm:$0xff]
  %v566 = vld [vmem:[%s564 + $0x8] sm:$0xff]
  %s567 = scalar_lea.vmem %s5, 32
  %v568 = vld [vmem:[%s567] sm:$0xff]
  %v570 = vsel %vm62, %v559, 0
  %572 = vmatpush.msra.mxu0 0.0
  %573 = vmatpush.msra.mxu0 0.0
  %574 = vmatpush.msra.mxu0 0.0
  %575 = vmatpush.msra.mxu0 0.0
  %576 = vmatpush.msra.mxu0 0.0
  %577 = vmatpush.msra.mxu0 0.0
  %578 = vmatpush.msra.mxu0 0.0
  %579 = vmatpush.msra.mxu0 0.0
  %580 = vmatpush.msra.mxu0 %v199
  %581 = vmatpush.msra.mxu0 %v197
  %582 = vmatpush.msra.mxu0 %v195
  %583 = vmatpush.msra.mxu0 %v193
  %584 = vmatpush.msra.mxu0 %v191
  %585 = vmatpush.msra.mxu0 %v189
  %586 = vmatpush.msra.mxu0 %v187
  %587 = vmatpush.msra.mxu0 %v185
  %588 = vmatmul.f32.gmra.mxu0 %v570
  %v589 = vpop.f32.mrf.mxu0
  %v590 = vadd.f32 0.0, %v589
  %591 = vdwg.mxu0
  %592 = vmatpush.msra.mxu0 0.0
  %593 = vmatpush.msra.mxu0 0.0
  %594 = vmatpush.msra.mxu0 0.0
  %595 = vmatpush.msra.mxu0 0.0
  %596 = vmatpush.msra.mxu0 0.0
  %597 = vmatpush.msra.mxu0 0.0
  %598 = vmatpush.msra.mxu0 0.0
  %599 = vmatpush.msra.mxu0 0.0
  %600 = vmatpush.msra.mxu0 %v200
  %601 = vmatpush.msra.mxu0 %v198
  %602 = vmatpush.msra.mxu0 %v196
  %603 = vmatpush.msra.mxu0 %v194
  %604 = vmatpush.msra.mxu0 %v192
  %605 = vmatpush.msra.mxu0 %v190
  %606 = vmatpush.msra.mxu0 %v188
  %607 = vmatpush.msra.mxu0 %v186
  %608 = vmatmul.f32.gmra.mxu0 %v570
  %v609 = vpop.f32.mrf.mxu0
  %v610 = vadd.f32 0.0, %v609
  %611 = vdwg.mxu0
  %v612 = vadd.f32 %v565, %v590
  %v613 = vxor.u32 %v612, 2147483648
  %v614 = vmul.f32 %v613, 1.442695
  %v615 = vpow.pop %v614
  %v616 = vadd.f32 %v615, 1.0
  %v617 = vrcp.pop %v616
  %v618 = vmul.f32 %v616, %v617
  %v619 = vsub.f32 1.0, %v618
  %v620 = vmul.f32 %v617, %v619
  %v621 = vadd.f32 %v617, %v620
  %vm622 = vweird.f32 %v616
  %vm623 = vweird.f32 %v617
  %vm624 = vmor %vm622, %vm623
  %v625 = vsel %vm624, %v617, %v621
  %v626 = vand.u32 2147483647, %v616
  %vm627 = vcmp.eq.f32.partialorder %v626, 8.507059e+37
  %v628 = vand.u32 %v616, 2147483648
  %v629 = vor.u32 1.1754944e-38, %v628
  %v630 = vsel %vm627, %v629, %v625
  %v631 = vmul.f32 1.0, %v630
  %v632 = vadd.f32 %v610, %v272
  %v633 = vmul.f32 %v631, %v632
  %v634 = vadd.f32 %v566, %v633
  %v635 = vtanh.pop %v634
  %v636 = vsub.f32 %v559, %v635
  %638 = vrot.lane.b32.xlu0 %v636, 64
  %v639 = vpop.permute.xlu0 %638
  %v641 = vmul.f32 %v631, %v639
  %643 = vrot.lane.b32.xlu0 %v641, 64
  %v644 = vpop.permute.xlu0 %643
  %v646 = vadd.f32 %v635, %v644
  %v647 = vsub.f32 %v646, %v559
  %v648 = vmul.f32 %v568, %v647
  %v649 = vadd.f32 %v559, %v648
  %s650 = scalar_lea.vmem [#allocation3], 32
  %651 = vst.msk [vmem:[%s650] sm:$0xff] %vm62, %v649
  %s652 = smul.u32 5, 2
  %s653 = smul.addr %s652, 8
  %s654 = scalar_lea.vmem [#allocation2], %s653
  %v655 = vld [vmem:[%s654] sm:$0xff]
  %v656 = vld [vmem:[%s654 + $0x8] sm:$0xff]
  %s657 = scalar_lea.vmem %s5, 40
  %v658 = vld [vmem:[%s657] sm:$0xff]
  %v660 = vsel %vm62, %v649, 0
  %662 = vmatpush.msra.mxu0 0.0
  %663 = vmatpush.msra.mxu0 0.0
  %664 = vmatpush.msra.mxu0 0.0
  %665 = vmatpush.msra.mxu0 0.0
  %666 = vmatpush.msra.mxu0 0.0
  %667 = vmatpush.msra.mxu0 0.0
  %668 = vmatpush.msra.mxu0 0.0
  %669 = vmatpush.msra.mxu0 0.0
  %670 = vmatpush.msra.mxu0 %v199
  %671 = vmatpush.msra.mxu0 %v197
  %672 = vmatpush.msra.mxu0 %v195
  %673 = vmatpush.msra.mxu0 %v193
  %674 = vmatpush.msra.mxu0 %v191
  %675 = vmatpush.msra.mxu0 %v189
  %676 = vmatpush.msra.mxu0 %v187
  %677 = vmatpush.msra.mxu0 %v185
  %678 = vmatmul.f32.gmra.mxu0 %v660
  %v679 = vpop.f32.mrf.mxu0
  %v680 = vadd.f32 0.0, %v679
  %681 = vdwg.mxu0
  %682 = vmatpush.msra.mxu0 0.0
  %683 = vmatpush.msra.mxu0 0.0
  %684 = vmatpush.msra.mxu0 0.0
  %685 = vmatpush.msra.mxu0 0.0
  %686 = vmatpush.msra.mxu0 0.0
  %687 = vmatpush.msra.mxu0 0.0
  %688 = vmatpush.msra.mxu0 0.0
  %689 = vmatpush.msra.mxu0 0.0
  %690 = vmatpush.msra.mxu0 %v200
  %691 = vmatpush.msra.mxu0 %v198
  %692 = vmatpush.msra.mxu0 %v196
  %693 = vmatpush.msra.mxu0 %v194
  %694 = vmatpush.msra.mxu0 %v192
  %695 = vmatpush.msra.mxu0 %v190
  %696 = vmatpush.msra.mxu0 %v188
  %697 = vmatpush.msra.mxu0 %v186
  %698 = vmatmul.f32.gmra.mxu0 %v660
  %v699 = vpop.f32.mrf.mxu0
  %v700 = vadd.f32 0.0, %v699
  %701 = vdwg.mxu0
  %v702 = vadd.f32 %v655, %v680
  %v703 = vxor.u32 %v702, 2147483648
  %v704 = vmul.f32 %v703, 1.442695
  %v705 = vpow.pop %v704
  %v706 = vadd.f32 %v705, 1.0
  %v707 = vrcp.pop %v706
  %v708 = vmul.f32 %v706, %v707
  %v709 = vsub.f32 1.0, %v708
  %v710 = vmul.f32 %v707, %v709
  %v711 = vadd.f32 %v707, %v710
  %vm712 = vweird.f32 %v706
  %vm713 = vweird.f32 %v707
  %vm714 = vmor %vm712, %vm713
  %v715 = vsel %vm714, %v707, %v711
  %v716 = vand.u32 2147483647, %v706
  %vm717 = vcmp.eq.f32.partialorder %v716, 8.507059e+37
  %v718 = vand.u32 %v706, 2147483648
  %v719 = vor.u32 1.1754944e-38, %v718
  %v720 = vsel %vm717, %v719, %v715
  %v721 = vmul.f32 1.0, %v720
  %v722 = vadd.f32 %v700, %v272
  %v723 = vmul.f32 %v721, %v722
  %v724 = vadd.f32 %v656, %v723
  %v725 = vtanh.pop %v724
  %v726 = vsub.f32 %v649, %v725
  %728 = vrot.lane.b32.xlu0 %v726, 64
  %v729 = vpop.permute.xlu0 %728
  %v731 = vmul.f32 %v721, %v729
  %733 = vrot.lane.b32.xlu0 %v731, 64
  %v734 = vpop.permute.xlu0 %733
  %v736 = vadd.f32 %v725, %v734
  %v737 = vsub.f32 %v736, %v649
  %v738 = vmul.f32 %v658, %v737
  %v739 = vadd.f32 %v649, %v738
  %s740 = scalar_lea.vmem [#allocation3], 40
  %741 = vst.msk [vmem:[%s740] sm:$0xff] %vm62, %v739
  %s742 = smul.u32 6, 2
  %s743 = smul.addr %s742, 8
  %s744 = scalar_lea.vmem [#allocation2], %s743
  %v745 = vld [vmem:[%s744] sm:$0xff]
  %v746 = vld [vmem:[%s744 + $0x8] sm:$0xff]
  %s747 = scalar_lea.vmem %s5, 48
  %v748 = vld [vmem:[%s747] sm:$0xff]
  %v750 = vsel %vm62, %v739, 0
  %752 = vmatpush.msra.mxu0 0.0
  %753 = vmatpush.msra.mxu0 0.0
  %754 = vmatpush.msra.mxu0 0.0
  %755 = vmatpush.msra.mxu0 0.0
  %756 = vmatpush.msra.mxu0 0.0
  %757 = vmatpush.msra.mxu0 0.0
  %758 = vmatpush.msra.mxu0 0.0
  %759 = vmatpush.msra.mxu0 0.0
  %760 = vmatpush.msra.mxu0 %v199
  %761 = vmatpush.msra.mxu0 %v197
  %762 = vmatpush.msra.mxu0 %v195
  %763 = vmatpush.msra.mxu0 %v193
  %764 = vmatpush.msra.mxu0 %v191
  %765 = vmatpush.msra.mxu0 %v189
  %766 = vmatpush.msra.mxu0 %v187
  %767 = vmatpush.msra.mxu0 %v185
  %768 = vmatmul.f32.gmra.mxu0 %v750
  %v769 = vpop.f32.mrf.mxu0
  %v770 = vadd.f32 0.0, %v769
  %771 = vdwg.mxu0
  %772 = vmatpush.msra.mxu0 0.0
  %773 = vmatpush.msra.mxu0 0.0
  %774 = vmatpush.msra.mxu0 0.0
  %775 = vmatpush.msra.mxu0 0.0
  %776 = vmatpush.msra.mxu0 0.0
  %777 = vmatpush.msra.mxu0 0.0
  %778 = vmatpush.msra.mxu0 0.0
  %779 = vmatpush.msra.mxu0 0.0
  %780 = vmatpush.msra.mxu0 %v200
  %781 = vmatpush.msra.mxu0 %v198
  %782 = vmatpush.msra.mxu0 %v196
  %783 = vmatpush.msra.mxu0 %v194
  %784 = vmatpush.msra.mxu0 %v192
  %785 = vmatpush.msra.mxu0 %v190
  %786 = vmatpush.msra.mxu0 %v188
  %787 = vmatpush.msra.mxu0 %v186
  %788 = vmatmul.f32.gmra.mxu0 %v750
  %v789 = vpop.f32.mrf.mxu0
  %v790 = vadd.f32 0.0, %v789
  %791 = vdwg.mxu0
  %v792 = vadd.f32 %v745, %v770
  %v793 = vxor.u32 %v792, 2147483648
  %v794 = vmul.f32 %v793, 1.442695
  %v795 = vpow.pop %v794
  %v796 = vadd.f32 %v795, 1.0
  %v797 = vrcp.pop %v796
  %v798 = vmul.f32 %v796, %v797
  %v799 = vsub.f32 1.0, %v798
  %v800 = vmul.f32 %v797, %v799
  %v801 = vadd.f32 %v797, %v800
  %vm802 = vweird.f32 %v796
  %vm803 = vweird.f32 %v797
  %vm804 = vmor %vm802, %vm803
  %v805 = vsel %vm804, %v797, %v801
  %v806 = vand.u32 2147483647, %v796
  %vm807 = vcmp.eq.f32.partialorder %v806, 8.507059e+37
  %v808 = vand.u32 %v796, 2147483648
  %v809 = vor.u32 1.1754944e-38, %v808
  %v810 = vsel %vm807, %v809, %v805
  %v811 = vmul.f32 1.0, %v810
  %v812 = vadd.f32 %v790, %v272
  %v813 = vmul.f32 %v811, %v812
  %v814 = vadd.f32 %v746, %v813
  %v815 = vtanh.pop %v814
  %v816 = vsub.f32 %v739, %v815
  %818 = vrot.lane.b32.xlu0 %v816, 64
  %v819 = vpop.permute.xlu0 %818
  %v821 = vmul.f32 %v811, %v819
  %823 = vrot.lane.b32.xlu0 %v821, 64
  %v824 = vpop.permute.xlu0 %823
  %v826 = vadd.f32 %v815, %v824
  %v827 = vsub.f32 %v826, %v739
  %v828 = vmul.f32 %v748, %v827
  %v829 = vadd.f32 %v739, %v828
  %s830 = scalar_lea.vmem [#allocation3], 48
  %831 = vst.msk [vmem:[%s830] sm:$0xff] %vm62, %v829
  %s832 = smul.u32 7, 2
  %s833 = smul.addr %s832, 8
  %s834 = scalar_lea.vmem [#allocation2], %s833
  %v835 = vld [vmem:[%s834] sm:$0xff]
  %v836 = vld [vmem:[%s834 + $0x8] sm:$0xff]
  %s837 = scalar_lea.vmem %s5, 56
  %v838 = vld [vmem:[%s837] sm:$0xff]
  %v840 = vsel %vm62, %v829, 0
  %842 = vmatpush.msra.mxu0 0.0
  %843 = vmatpush.msra.mxu0 0.0
  %844 = vmatpush.msra.mxu0 0.0
  %845 = vmatpush.msra.mxu0 0.0
  %846 = vmatpush.msra.mxu0 0.0
  %847 = vmatpush.msra.mxu0 0.0
  %848 = vmatpush.msra.mxu0 0.0
  %849 = vmatpush.msra.mxu0 0.0
  %850 = vmatpush.msra.mxu0 %v199
  %851 = vmatpush.msra.mxu0 %v197
  %852 = vmatpush.msra.mxu0 %v195
  %853 = vmatpush.msra.mxu0 %v193
  %854 = vmatpush.msra.mxu0 %v191
  %855 = vmatpush.msra.mxu0 %v189
  %856 = vmatpush.msra.mxu0 %v187
  %857 = vmatpush.msra.mxu0 %v185
  %858 = vmatmul.f32.gmra.mxu0 %v840
  %v859 = vpop.f32.mrf.mxu0
  %v860 = vadd.f32 0.0, %v859
  %861 = vdwg.mxu0
  %862 = vmatpush.msra.mxu0 0.0
  %863 = vmatpush.msra.mxu0 0.0
  %864 = vmatpush.msra.mxu0 0.0
  %865 = vmatpush.msra.mxu0 0.0
  %866 = vmatpush.msra.mxu0 0.0
  %867 = vmatpush.msra.mxu0 0.0
  %868 = vmatpush.msra.mxu0 0.0
  %869 = vmatpush.msra.mxu0 0.0
  %870 = vmatpush.msra.mxu0 %v200
  %871 = vmatpush.msra.mxu0 %v198
  %872 = vmatpush.msra.mxu0 %v196
  %873 = vmatpush.msra.mxu0 %v194
  %874 = vmatpush.msra.mxu0 %v192
  %875 = vmatpush.msra.mxu0 %v190
  %876 = vmatpush.msra.mxu0 %v188
  %877 = vmatpush.msra.mxu0 %v186
  %878 = vmatmul.f32.gmra.mxu0 %v840
  %v879 = vpop.f32.mrf.mxu0
  %v880 = vadd.f32 0.0, %v879
  %881 = vdwg.mxu0
  %v882 = vadd.f32 %v835, %v860
  %v883 = vxor.u32 %v882, 2147483648
  %v884 = vmul.f32 %v883, 1.442695
  %v885 = vpow.pop %v884
  %v886 = vadd.f32 %v885, 1.0
  %v887 = vrcp.pop %v886
  %v888 = vmul.f32 %v886, %v887
  %v889 = vsub.f32 1.0, %v888
  %v890 = vmul.f32 %v887, %v889
  %v891 = vadd.f32 %v887, %v890
  %vm892 = vweird.f32 %v886
  %vm893 = vweird.f32 %v887
  %vm894 = vmor %vm892, %vm893
  %v895 = vsel %vm894, %v887, %v891
  %v896 = vand.u32 2147483647, %v886
  %vm897 = vcmp.eq.f32.partialorder %v896, 8.507059e+37
  %v898 = vand.u32 %v886, 2147483648
  %v899 = vor.u32 1.1754944e-38, %v898
  %v900 = vsel %vm897, %v899, %v895
  %v901 = vmul.f32 1.0, %v900
  %v902 = vadd.f32 %v880, %v272
  %v903 = vmul.f32 %v901, %v902
  %v904 = vadd.f32 %v836, %v903
  %v905 = vtanh.pop %v904
  %v906 = vsub.f32 %v829, %v905
  %908 = vrot.lane.b32.xlu0 %v906, 64
  %v909 = vpop.permute.xlu0 %908
  %v911 = vmul.f32 %v901, %v909
  %913 = vrot.lane.b32.xlu0 %v911, 64
  %v914 = vpop.permute.xlu0 %913
  %v916 = vadd.f32 %v905, %v914
  %v917 = vsub.f32 %v916, %v829
  %v918 = vmul.f32 %v838, %v917
  %v919 = vadd.f32 %v829, %v918
  %s920 = scalar_lea.vmem [#allocation3], 56
  %921 = vst.msk [vmem:[%s920] sm:$0xff] %vm62, %v919
  %v922 = vld [vmem:[#allocation3] sm:$0xff]
  %v923 = vld [vmem:[#allocation3 + $0x8] sm:$0xff]
  %v924 = vld [vmem:[#allocation3 + $0x10] sm:$0xff]
  %v925 = vld [vmem:[#allocation3 + $0x18] sm:$0xff]
  %v926 = vld [vmem:[#allocation3 + $0x20] sm:$0xff]
  %v927 = vld [vmem:[#allocation3 + $0x28] sm:$0xff]
  %v928 = vld [vmem:[#allocation3 + $0x30] sm:$0xff]
  %v929 = vld [vmem:[#allocation3 + $0x38] sm:$0xff]
  %v930 = vld [vmem:[%s5] sm:$0xff]
  %v931 = vld [vmem:[%s5 + $0x8] sm:$0xff]
  %v932 = vld [vmem:[%s5 + $0x10] sm:$0xff]
  %v933 = vld [vmem:[%s5 + $0x18] sm:$0xff]
  %v934 = vld [vmem:[%s5 + $0x20] sm:$0xff]
  %v935 = vld [vmem:[%s5 + $0x28] sm:$0xff]
  %v936 = vld [vmem:[%s5 + $0x30] sm:$0xff]
  %v937 = vld [vmem:[%s5 + $0x38] sm:$0xff]
  %v938 = vmul.f32 %v922, %v930
  %v939 = vmul.f32 %v923, %v931
  %v940 = vmul.f32 %v924, %v932
  %v941 = vmul.f32 %v925, %v933
  %v942 = vmul.f32 %v926, %v934
  %v943 = vmul.f32 %v927, %v935
  %v944 = vmul.f32 %v928, %v936
  %v945 = vmul.f32 %v929, %v937
  %v946 = vld [vmem:[%s6] sm:$0xff]
  %v947 = vld [vmem:[%s6 + $0x8] sm:$0xff]
  %v948 = vld [vmem:[%s6 + $0x10] sm:$0xff]
  %v949 = vld [vmem:[%s6 + $0x18] sm:$0xff]
  %v950 = vld [vmem:[%s7] sm:$0xff]
  %v951 = vld [vmem:[%s7 + $0x8] sm:$0xff]
  %v952 = vld [vmem:[%s7 + $0x10] sm:$0xff]
  %v953 = vld [vmem:[%s7 + $0x18] sm:$0xff]
  %962 = vrot.lane.b32.xlu0 %v945, 96
  %v963 = vpop.permute.xlu0 %962
  %964 = vrot.lane.b32.xlu0 %v944, 96
  %v965 = vpop.permute.xlu0 %964
  %966 = vrot.lane.b32.xlu0 %v943, 96
  %v967 = vpop.permute.xlu0 %966
  %968 = vrot.lane.b32.xlu0 %v942, 96
  %v969 = vpop.permute.xlu0 %968
  %970 = vrot.lane.b32.xlu0 %v941, 96
  %v971 = vpop.permute.xlu0 %970
  %972 = vrot.lane.b32.xlu0 %v940, 96
  %v973 = vpop.permute.xlu0 %972
  %974 = vrot.lane.b32.xlu0 %v939, 96
  %v975 = vpop.permute.xlu0 %974
  %976 = vrot.lane.b32.xlu0 %v938, 96
  %v977 = vpop.permute.xlu0 %976
  %vm978 = vcmask 261120
  %v979 = vsel %vm978, %v963, 0
  %v981 = vsel %vm978, %v965, 0
  %v983 = vsel %vm978, %v967, 0
  %v985 = vsel %vm978, %v969, 0
  %v987 = vsel %vm978, %v971, 0
  %v989 = vsel %vm978, %v973, 0
  %v991 = vsel %vm978, %v975, 0
  %v993 = vsel %vm978, %v977, 0
  %995 = vmatpush.msra.mxu0 0.0
  %996 = vmatpush.msra.mxu0 0.0
  %997 = vmatpush.msra.mxu0 0.0
  %998 = vmatpush.msra.mxu0 0.0
  %999 = vmatpush.msra.mxu0 0.0
  %1000 = vmatpush.msra.mxu0 0.0
  %1001 = vmatpush.msra.mxu0 0.0
  %1002 = vmatpush.msra.mxu0 0.0
  %1003 = vmatpush.msra.mxu0 0.0
  %1004 = vmatpush.msra.mxu0 0.0
  %1005 = vmatpush.msra.mxu0 0.0
  %1006 = vmatpush.msra.mxu0 0.0
  %1007 = vmatpush.msra.mxu0 %v953
  %1008 = vmatpush.msra.mxu0 %v952
  %1009 = vmatpush.msra.mxu0 %v951
  %1010 = vmatpush.msra.mxu0 %v950
  %1011 = vmatmul.f32.gmra.mxu0 %v979
  %v1012 = vpop.f32.mrf.mxu0
  %v1013 = vadd.f32 0.0, %v1012
  %1014 = vmatmul.f32.gmra.mxu0 %v981
  %v1015 = vpop.f32.mrf.mxu0
  %v1016 = vadd.f32 0.0, %v1015
  %1017 = vmatmul.f32.gmra.mxu0 %v983
  %v1018 = vpop.f32.mrf.mxu0
  %v1019 = vadd.f32 0.0, %v1018
  %1020 = vmatmul.f32.gmra.mxu0 %v985
  %v1021 = vpop.f32.mrf.mxu0
  %v1022 = vadd.f32 0.0, %v1021
  %1023 = vmatmul.f32.gmra.mxu0 %v987
  %v1024 = vpop.f32.mrf.mxu0
  %v1025 = vadd.f32 0.0, %v1024
  %1026 = vmatmul.f32.gmra.mxu0 %v989
  %v1027 = vpop.f32.mrf.mxu0
  %v1028 = vadd.f32 0.0, %v1027
  %1029 = vmatmul.f32.gmra.mxu0 %v991
  %v1030 = vpop.f32.mrf.mxu0
  %v1031 = vadd.f32 0.0, %v1030
  %1032 = vmatmul.f32.gmra.mxu0 %v993
  %v1033 = vpop.f32.mrf.mxu0
  %v1034 = vadd.f32 0.0, %v1033
  %1035 = vdwg.mxu0
  %v1036 = vsel %vm978, %v938, 0
  %v1038 = vsel %vm978, %v939, 0
  %v1040 = vsel %vm978, %v940, 0
  %v1042 = vsel %vm978, %v941, 0
  %v1044 = vsel %vm978, %v942, 0
  %v1046 = vsel %vm978, %v943, 0
  %v1048 = vsel %vm978, %v944, 0
  %v1050 = vsel %vm978, %v945, 0
  %1052 = vmatpush.msra.mxu0 0.0
  %1053 = vmatpush.msra.mxu0 0.0
  %1054 = vmatpush.msra.mxu0 0.0
  %1055 = vmatpush.msra.mxu0 0.0
  %1056 = vmatpush.msra.mxu0 0.0
  %1057 = vmatpush.msra.mxu0 0.0
  %1058 = vmatpush.msra.mxu0 0.0
  %1059 = vmatpush.msra.mxu0 0.0
  %1060 = vmatpush.msra.mxu0 0.0
  %1061 = vmatpush.msra.mxu0 0.0
  %1062 = vmatpush.msra.mxu0 0.0
  %1063 = vmatpush.msra.mxu0 0.0
  %1064 = vmatpush.msra.mxu0 %v949
  %1065 = vmatpush.msra.mxu0 %v948
  %1066 = vmatpush.msra.mxu0 %v947
  %1067 = vmatpush.msra.mxu0 %v946
  %1068 = vmatmul.f32.gmra.mxu0 %v1036
  %v1069 = vpop.f32.mrf.mxu0
  %v1070 = vadd.f32 %v1013, %v1069
  %1071 = vmatmul.f32.gmra.mxu0 %v1038
  %v1072 = vpop.f32.mrf.mxu0
  %v1073 = vadd.f32 %v1016, %v1072
  %1074 = vmatmul.f32.gmra.mxu0 %v1040
  %v1075 = vpop.f32.mrf.mxu0
  %v1076 = vadd.f32 %v1019, %v1075
  %1077 = vmatmul.f32.gmra.mxu0 %v1042
  %v1078 = vpop.f32.mrf.mxu0
  %v1079 = vadd.f32 %v1022, %v1078
  %1080 = vmatmul.f32.gmra.mxu0 %v1044
  %v1081 = vpop.f32.mrf.mxu0
  %v1082 = vadd.f32 %v1025, %v1081
  %1083 = vmatmul.f32.gmra.mxu0 %v1046
  %v1084 = vpop.f32.mrf.mxu0
  %v1085 = vadd.f32 %v1028, %v1084
  %1086 = vmatmul.f32.gmra.mxu0 %v1048
  %v1087 = vpop.f32.mrf.mxu0
  %v1088 = vadd.f32 %v1031, %v1087
  %1089 = vmatmul.f32.gmra.mxu0 %v1050
  %v1090 = vpop.f32.mrf.mxu0
  %v1091 = vadd.f32 %v1034, %v1090
  %1092 = vdwg.mxu0
  %v1093 = vld [vmem:[%s8] sm:$0x1]
  %v1095 = vperm.slane %v1093, 0
  %v1097 = vadd.f32 %v1070, %v1095
  %v1098 = vadd.f32 %v1073, %v1095
  %v1099 = vadd.f32 %v1076, %v1095
  %v1100 = vadd.f32 %v1079, %v1095
  %v1101 = vadd.f32 %v1082, %v1095
  %v1102 = vadd.f32 %v1085, %v1095
  %v1103 = vadd.f32 %v1088, %v1095
  %v1104 = vadd.f32 %v1091, %v1095
  %1105 = vst [vmem:[%s9] sm:$0xff] %v1097
  %1106 = vst [vmem:[%s9 + $0x8] sm:$0xff] %v1098
  %1107 = vst [vmem:[%s9 + $0x10] sm:$0xff] %v1099
  %1108 = vst [vmem:[%s9 + $0x18] sm:$0xff] %v1100
  %1109 = vst [vmem:[%s9 + $0x20] sm:$0xff] %v1101
  %1110 = vst [vmem:[%s9 + $0x28] sm:$0xff] %v1102
  %1111 = vst [vmem:[%s9 + $0x30] sm:$0xff] %v1103
  %1112 = vst [vmem:[%s9 + $0x38] sm:$0xff] %v1104
  // Predicated region
  $region38: #{encoder_hattn_forward.1} parent=0 // pred_check
    _
  $region39: #{encoder_hattn_forward.1} parent=0 // pred_check_branch
    %1114 = sbr.rel (0) target = $region41
  $region40: #{encoder_hattn_forward.1} parent=0 // pred_region
    _
  $region41: #{encoder_hattn_forward.1} parent=0 // pred_fallthru
    _
  // Predicated region
  $region42: #{encoder_hattn_forward.1} parent=0 // pred_check
    _
  $region43: #{encoder_hattn_forward.1} parent=0 // pred_check_branch
    %1116 = sbr.rel (0) target = $region45
  $region44: #{encoder_hattn_forward.1} parent=0 // pred_region
    _
  $region45: #{encoder_hattn_forward.1} parent=0 // pred_fallthru
    _

</llo_original>
